<compile_context>
chip_gen: v7x
topology: tpu7x:2x2x1
jax: 0.10.0
libtpu: 0.0.40
codegen_flags: <defaults>
</compile_context>

<pallas_src>
import jax
import jax.numpy as jnp
from jax.experimental import pallas as pl
from jax.experimental.pallas import tpu as pltpu

EPS = 1e-5          # BatchNorm1d default
LANE = 128          # lane width: channel padding target


def _round_up(x, m):
    return (x + m - 1) // m * m


# --------------------------------------------------------------------------- #
# kernel bodies
# --------------------------------------------------------------------------- #
def _dot32(a, w):
    return jnp.dot(a, w, preferred_element_type=jnp.float32)


def _write_partial_stats(s_ref, y2d):
    """Per-tile per-channel [sum, sum_sq] (f32) for the global BN reduction."""
    s_ref[0, 0:1, :] = jnp.sum(y2d, axis=0, keepdims=True)
    s_ref[0, 1:2, :] = jnp.sum(y2d * y2d, axis=0, keepdims=True)


def _make_pass1_kernel(n_tile, L, cp_in, cp_out, has_shortcut):
    """conv1 (+ fused 1x1 shortcut columns) and their BN partial statistics."""
    def kernel(*refs):
        if has_shortcut:
            x_ref, wside_ref, wc_ref, y1_ref, s1_ref, ss_ref = refs
        else:
            x_ref, wside_ref, wc_ref, y1_ref, s1_ref = refs
        m = n_tile * L
        # x_ref is halo-padded along L (zero rows 0 and L+1): each tap is a slice.
        xl = x_ref[:, 0:L, :].reshape(m, cp_in)
        xc = x_ref[:, 1:L + 1, :].reshape(m, cp_in)
        xr = x_ref[:, 2:L + 2, :].reshape(m, cp_in)
        # centre-tap weight carries [w1_center | ws]: shortcut rides in the
        # otherwise half-empty MXU N dimension (256-wide on v6e/v7x).
        yc = _dot32(xc, wc_ref[...])                       # (m, cp_out or 2*cp_out)
        y1 = yc[:, :cp_out] + _dot32(xl, wside_ref[0]) + _dot32(xr, wside_ref[1])
        _write_partial_stats(s1_ref, y1)
        if has_shortcut:
            # stats only -- ys itself is recomputed in pass 3, never stored.
            _write_partial_stats(ss_ref, yc[:, cp_out:])
        # store y1 in the same halo-padded layout conv2 will read (bf16 stream).
        zrow = jnp.zeros((n_tile, 1, cp_out), jnp.bfloat16)
        y1_ref[:, 0:1, :] = zrow
        y1_ref[:, L + 1:L + 2, :] = zrow
        y1_ref[:, 1:L + 1, :] = y1.reshape(n_tile, L, cp_out).astype(jnp.bfloat16)
    return kernel


def _make_pass2_kernel(n_tile, L, cp_out):
    """bn1 + relu fused with conv2; emits bn2 partial statistics."""
    lp2 = L + 2

    def kernel(y1_ref, sc1_ref, sh1_ref, w2_ref, y2_ref, s2_ref):
        y1 = y1_ref[...].astype(jnp.float32)               # (n, L+2, c)
        # conv2's "same" padding must see zeros of h, not bn(0); mask halo rows.
        row = jax.lax.broadcasted_iota(jnp.int32, (n_tile, lp2, cp_out), 1)
        valid = jnp.logical_and(row >= 1, row <= L)
        h = jnp.where(valid,
                      jnp.maximum(y1 * sc1_ref[...] + sh1_ref[...], 0.0),
                      0.0).astype(jnp.bfloat16)
        m = n_tile * L
        hl = h[:, 0:L, :].reshape(m, cp_out)
        hc = h[:, 1:L + 1, :].reshape(m, cp_out)
        hr = h[:, 2:L + 2, :].reshape(m, cp_out)
        y2 = _dot32(hc, w2_ref[1]) + _dot32(hl, w2_ref[0]) + _dot32(hr, w2_ref[2])
        _write_partial_stats(s2_ref, y2)
        y2_ref[...] = y2.reshape(n_tile, L, cp_out).astype(jnp.bfloat16)
    return kernel


def _make_pass3_kernel(n_tile, L, cp_in, cp_out, has_shortcut):
    """bn2 + residual add + relu; recomputes the 1x1 shortcut (MXU idle here)."""
    if has_shortcut:
        def kernel(y2_ref, x_ref, ws_ref, sc2_ref, sh2_ref, scs_ref, shs_ref, o_ref):
            m = n_tile * L
            xc = x_ref[:, 1:L + 1, :].reshape(m, cp_in)
            ys = _dot32(xc, ws_ref[...]).reshape(n_tile, L, cp_out)
            y2n = y2_ref[...].astype(jnp.float32) * sc2_ref[...] + sh2_ref[...]
            res = ys * scs_ref[...] + shs_ref[...]
            o_ref[...] = jnp.maximum(y2n + res, 0.0).astype(jnp.bfloat16)
    else:
        def kernel(y2_ref, x_ref, sc2_ref, sh2_ref, o_ref):
            res = x_ref[:, 1:L + 1, :].astype(jnp.float32)
            y2n = y2_ref[...].astype(jnp.float32) * sc2_ref[...] + sh2_ref[...]
            o_ref[...] = jnp.maximum(y2n + res, 0.0).astype(jnp.bfloat16)
    return kernel


# --------------------------------------------------------------------------- #
# specs / tiling helpers
# --------------------------------------------------------------------------- #
def _tile_spec(n_tile, rows, cp):
    return pl.BlockSpec((n_tile, rows, cp), lambda i: (i, 0, 0))


def _stat_spec(cp):
    return pl.BlockSpec((1, 2, cp), lambda i: (i, 0, 0))


def _full_spec(shape):
    zero = (0,) * len(shape)
    return pl.BlockSpec(shape, lambda i: zero)


def _vmem_budgets():
    """Generation-aware VMEM sizing.

    128 MiB chips (v5e / v6e): big tiles + ~100 MiB scoped limit.
    64 MiB-per-core chips (v7x) or unknown: conservative 48 MiB / 8 MiB tiles."""
    try:
        cap = int(pltpu.get_tpu_info().vmem_capacity_bytes)
    except Exception:
        cap = 64 << 20
    if cap >= (96 << 20):
        return 100 << 20, 24 << 20      # (vmem_limit_bytes, per-tile budget)
    return 48 << 20, 8 << 20


def _pick_n_tile(N, L, cp_in, cp_out, budget_bytes):
    """Largest divisor of N fitting the per-tile budget, preferring >=2 grid steps
    (pipelining / megacore), an even step count (v7x has two TensorCores on the
    'parallel' axis) and an MXU-friendly M = n_tile*L."""
    per_n = ((L + 2) * (cp_in + cp_out) * 2 * 2     # double-buffered bf16 I/O tiles
             + L * (cp_in + cp_out) * 3 * 2         # shifted-tap bf16 operands
             + L * 3 * cp_out * 4)                  # f32 matmul accumulators
    feasible = [d for d in range(1, N + 1)
                if N % d == 0 and d * per_n <= budget_bytes]
    if not feasible:
        return 1

    def score(d):
        nt = N // d
        return (nt >= 2 or N == 1,       # keep the pipeline / both cores busy
                nt % 2 == 0 or nt == 1,  # even split across v7x's two TensorCores
                min(d * L, 512),         # fill the MXU's M dimension
                d)
    return max(feasible, key=score)


def _bn_scale_shift(stats, gamma, beta, count):
    """Fold global batch stats + affine params into per-channel scale/shift.

    stats: (num_tiles, 2, Cp) partial [sum, sum_sq]; gamma/beta: (1, Cp).
    Single-pass biased variance, matching train-mode BatchNorm1d."""
    s = jnp.sum(stats, axis=0)                    # (2, Cp)
    mean = s[0] / count
    var = jnp.maximum(s[1] / count - mean * mean, 0.0)   # guard cancellation
    scale = gamma[0] * jax.lax.rsqrt(var + EPS)
    shift = beta[0] - mean * scale
    return scale[None, :], shift[None, :]         # (1, Cp) each


# --------------------------------------------------------------------------- #
# forward
# --------------------------------------------------------------------------- #
def postres_forward_nlc(x_nlc, params, stride=1):
    """PostRes forward on a channels-last (N, L, C_in) activation.

    Returns a (N, L, C_out) bf16 array (cast back in the NCL entry point)."""
    if stride != 1:
        # TODO(synk): stride>1 (strided conv1 + strided 1x1 shortcut) not implemented.
        raise NotImplementedError("stride != 1 not supported by this kernel")

    N, L, C_in = x_nlc.shape
    C_out = params['w1'].shape[2]
    has_shortcut = 'ws' in params
    if not has_shortcut:
        assert C_in == C_out, "identity residual requires matching channel counts"
    cp_in, cp_out = _round_up(C_in, LANE), _round_up(C_out, LANE)
    lp2 = L + 2
    count = float(N * L)

    # ---- wrapper-side layout: bf16, channels lane-padded, L halo-padded with zeros.
    x_pad = (jnp.zeros((N, lp2, cp_in), jnp.bfloat16)
             .at[:, 1:L + 1, :C_in].set(x_nlc.astype(jnp.bfloat16)))

    w1 = params['w1'].astype(jnp.float32)                 # (3, C_in, C_out)
    wside = (jnp.zeros((2, cp_in, cp_out), jnp.float32)
             .at[0, :C_in, :C_out].set(w1[0])
             .at[1, :C_in, :C_out].set(w1[2])).astype(jnp.bfloat16)
    c_mid = 2 * cp_out if has_shortcut else cp_out
    wc_f32 = jnp.zeros((cp_in, c_mid), jnp.float32).at[:C_in, :C_out].set(w1[1])
    if has_shortcut:
        ws_f32 = params['ws'].astype(jnp.float32)
        wc_f32 = wc_f32.at[:C_in, cp_out:cp_out + C_out].set(ws_f32)
        wsp = (jnp.zeros((cp_in, cp_out), jnp.float32)
               .at[:C_in, :C_out].set(ws_f32)).astype(jnp.bfloat16)
    wc = wc_f32.astype(jnp.bfloat16)
    w2 = (jnp.zeros((3, cp_out, cp_out), jnp.float32)
          .at[:, :C_out, :C_out].set(params['w2'])).astype(jnp.bfloat16)

    def padvec(v):
        # zero padding of gamma is load-bearing: padded lanes get scale=shift=0.
        return jnp.zeros((1, cp_out), jnp.float32).at[:, :C_out].set(
            v.astype(jnp.float32))

    g1, be1 = padvec(params['g1']), padvec(params['be1'])
    g2, be2 = padvec(params['g2']), padvec(params['be2'])
    if has_shortcut:
        gs, bes = padvec(params['gs']), padvec(params['bes'])
    # NOTE: conv biases b1/b2/bs are never loaded -- cancelled exactly by the
    #       train-mode BN mean subtraction.

    vmem_limit, tile_budget = _vmem_budgets()
    n_tile = _pick_n_tile(N, L, cp_in, cp_out, tile_budget)
    nt = N // n_tile
    cparams = pltpu.CompilerParams(
        dimension_semantics=("parallel",),           # batch tiles -> megacore
        vmem_limit_bytes=vmem_limit)

    stat_shape = jax.ShapeDtypeStruct((nt, 2, cp_out), jnp.float32)
    x_spec = _tile_spec(n_tile, lp2, cp_in)
    y1_spec = _tile_spec(n_tile, lp2, cp_out)
    y2_spec = _tile_spec(n_tile, L, cp_out)
    vec_spec = _full_spec((1, cp_out))

    # ---- pass 1: conv1 (+ fused 1x1 shortcut stats) ----------------------------
    out_specs1 = [y1_spec, _stat_spec(cp_out)]
    out_shape1 = [jax.ShapeDtypeStruct((N, lp2, cp_out), jnp.bfloat16), stat_shape]
    if has_shortcut:
        out_specs1.append(_stat_spec(cp_out))
        out_shape1.append(stat_shape)

    res1 = pl.pallas_call(
        _make_pass1_kernel(n_tile, L, cp_in, cp_out, has_shortcut),
        grid=(nt,),
        in_specs=[x_spec, _full_spec((2, cp_in, cp_out)), _full_spec((cp_in, c_mid))],
        out_specs=tuple(out_specs1),
        out_shape=tuple(out_shape1),
        compiler_params=cparams,
    )(x_pad, wside, wc)
    if has_shortcut:
        y1, s1, ss = res1
    else:
        y1, s1 = res1

    sc1, sh1 = _bn_scale_shift(s1, g1, be1, count)

    # ---- pass 2: bn1 + relu + conv2, bn2 partial statistics --------------------
    y2, s2 = pl.pallas_call(
        _make_pass2_kernel(n_tile, L, cp_out),
        grid=(nt,),
        in_specs=[y1_spec, vec_spec, vec_spec, _full_spec((3, cp_out, cp_out))],
        out_specs=(y2_spec, _stat_spec(cp_out)),
        out_shape=(jax.ShapeDtypeStruct((N, L, cp_out), jnp.bfloat16), stat_shape),
        compiler_params=cparams,
    )(y1, sc1, sh1, w2)

    sc2, sh2 = _bn_scale_shift(s2, g2, be2, count)

    # ---- pass 3: bn2 + (recomputed bn_s(shortcut) | identity) + relu -----------
    if has_shortcut:
        scs, shs = _bn_scale_shift(ss, gs, bes, count)
        in_specs3 = [y2_spec, x_spec, _full_spec((cp_in, cp_out)),
                     vec_spec, vec_spec, vec_spec, vec_spec]
        args3 = (y2, x_pad, wsp, sc2, sh2, scs, shs)
    else:
        in_specs3 = [y2_spec, x_spec, vec_spec, vec_spec]
        args3 = (y2, x_pad, sc2, sh2)

    out_p = pl.pallas_call(
        _make_pass3_kernel(n_tile, L, cp_in, cp_out, has_shortcut),
        grid=(nt,),
        in_specs=in_specs3,
        out_specs=y2_spec,
        out_shape=jax.ShapeDtypeStruct((N, L, cp_out), jnp.bfloat16),
        compiler_params=cparams,
    )(*args3)

    return out_p[:, :, :C_out]


def postres_forward(x_ncl, params, stride=1):
    """PyTorch-layout entry point: x is (N, C_in, L); returns (N, C_out, L)."""
    out_nlc = postres_forward_nlc(jnp.transpose(x_ncl, (0, 2, 1)), params, stride)
    # the transpose touches every element anyway; fold the cast back in with it.
    return jnp.transpose(out_nlc, (0, 2, 1)).astype(x_ncl.dtype)


# --------------------------------------------------------------------------- #
# synthetic params + pure-JAX reference (self-check only)
# --------------------------------------------------------------------------- #
def init_params(key, n_in, n_out, stride=1):
    """Deterministic synthetic parameters matching PostRes.__init__ shapes.

    Conv weights stored as (kernel, C_in, C_out) (PyTorch (C_out, C_in, k)
    transposed for channels-last); BN/bias vectors as (1, C)."""
    ks = jax.random.split(key, 12)
    p = {
        'w1':  0.2 * jax.random.normal(ks[0], (3, n_in, n_out), jnp.float32),
        'b1':  0.1 * jax.random.normal(ks[1], (1, n_out), jnp.float32),
        'g1':  1.0 + 0.1 * jax.random.normal(ks[2], (1, n_out), jnp.float32),
        'be1': 0.1 * jax.random.normal(ks[3], (1, n_out), jnp.float32),
        'w2':  0.2 * jax.random.normal(ks[4], (3, n_out, n_out), jnp.float32),
        'b2':  0.1 * jax.random.normal(ks[5], (1, n_out), jnp.float32),
        'g2':  1.0 + 0.1 * jax.random.normal(ks[6], (1, n_out), jnp.float32),
        'be2': 0.1 * jax.random.normal(ks[7], (1, n_out), jnp.float32),
    }
    if stride != 1 or n_out != n_in:        # shortcut = Conv1d(k=1) + BN
        p['ws'] = 0.2 * jax.random.normal(ks[8], (n_in, n_out), jnp.float32)
        p['bs'] = 0.1 * jax.random.normal(ks[9], (1, n_out), jnp.float32)
        p['gs'] = 1.0 + 0.1 * jax.random.normal(ks[10], (1, n_out), jnp.float32)
        p['bes'] = 0.1 * jax.random.normal(ks[11], (1, n_out), jnp.float32)
    return p


def postres_reference(x_ncl, params):
    """Pure-JAX f32 reference (keeps the conv biases) used only for self-check."""
    N, C_in, L = x_ncl.shape
    x = jnp.transpose(x_ncl, (0, 2, 1)).astype(jnp.float32)

    def conv3(y, w, b):
        yp = jnp.pad(y, ((0, 0), (1, 1), (0, 0)))
        acc = sum(jnp.einsum('nlc,cd->nld', yp[:, k:k + L, :], w[k]) for k in range(3))
        return acc + b[None]

    def bn(y, g, b):
        mean = y.mean(axis=(0, 1), keepdims=True)
        var = ((y - mean) ** 2).mean(axis=(0, 1), keepdims=True)
        return (y - mean) / jnp.sqrt(var + EPS) * g[None] + b[None]

    h = jax.nn.relu(bn(conv3(x, params['w1'], params['b1']), params['g1'], params['be1']))
    h2 = bn(conv3(h, params['w2'], params['b2']), params['g2'], params['be2'])
    if 'ws' in params:
        res = bn(jnp.einsum('nlc,cd->nld', x, params['ws']) + params['bs'][None],
                 params['gs'], params['bes'])
    else:
        res = x
    return jnp.transpose(jax.nn.relu(h2 + res), (0, 2, 1))


if __name__ == "__main__":
    key = jax.random.PRNGKey(0)
    k_x1, k_p1, k_x2, k_p2 = jax.random.split(key, 4)

    # Pre-round MXU operands (input + conv weights) to bf16-representable values
    # so the f32 reference isolates structural errors from the intended bf16 cast.
    def q(a):
        return a.astype(jnp.bfloat16).astype(jnp.float32)

    def run_case(kx, kp, N, n_in, n_out, L):
        x = q(jax.random.normal(kx, (N, n_in, L), jnp.float32))   # PyTorch NCL input
        params = init_params(kp, n_in, n_out, stride=1)
        for name in ('w1', 'w2', 'ws'):
            if name in params:
                params[name] = q(params[name])

        fwd = jax.jit(lambda xx, pp: postres_forward(xx, pp, stride=1))
        out = jax.block_until_ready(fwd(x, params))

        ref = postres_reference(x, params)
        assert out.shape == (N, n_out, L), out.shape
        assert bool(jnp.all(jnp.isfinite(out)))
        max_err = float(jnp.max(jnp.abs(out - ref)))
        # bf16 inter-pass activations add ~0.4% relative quantization noise on top
        # of the bf16 MXU operands, hence the slightly looser tolerance.
        assert jnp.allclose(out, ref, rtol=3e-2, atol=3e-2), max_err

    run_case(k_x1, k_p1, N=2, n_in=4, n_out=8, L=16)   # conv shortcut branch
    run_case(k_x2, k_p2, N=2, n_in=8, n_out=8, L=16)   # identity-residual branch

    print("KERNEL_OK")
</pallas_src>

<mosaic_0001>
module attributes {stable_mosaic.version = 11 : i64} {
  func.func @kernel(%arg0: i32, %arg1: memref<1x18x128xbf16, #tpu.memory_space<vmem>>, %arg2: memref<2x128x128xbf16, #tpu.memory_space<vmem>>, %arg3: memref<128x256xbf16, #tpu.memory_space<vmem>>, %arg4: memref<1x18x128xbf16, #tpu.memory_space<vmem>>, %arg5: memref<1x2x128xf32, #tpu.memory_space<vmem>>, %arg6: memref<1x2x128xf32, #tpu.memory_space<vmem>>) attributes {dimension_semantics = [#tpu.dimension_semantics<parallel>], iteration_bounds = array<i64: 2>, scalar_prefetch = 0 : i64, scratch_operands = 0 : i64, tpu.core_type = #tpu.core_type<tc>, window_params = [{transform_indices = @transform_0, window_bounds = array<i64: 1, 18, 128>}, {pipeline_mode = #tpu.pipeline_mode<synchronous>, transform_indices = @transform_1, window_bounds = array<i64: 2, 128, 128>}, {pipeline_mode = #tpu.pipeline_mode<synchronous>, transform_indices = @transform_2, window_bounds = array<i64: 128, 256>}, {transform_indices = @transform_3, window_bounds = array<i64: 1, 18, 128>}, {transform_indices = @transform_4, window_bounds = array<i64: 1, 2, 128>}, {transform_indices = @transform_5, window_bounds = array<i64: 1, 2, 128>}]} {
    %c0 = arith.constant 0 : index
    %c0_0 = arith.constant 0 : index
    %c0_1 = arith.constant 0 : index
    %0 = vector.load %arg1[%c0, %c0_0, %c0_1] : memref<1x18x128xbf16, #tpu.memory_space<vmem>>, vector<1x16x128xbf16>
    %1 = vector.shape_cast %0 : vector<1x16x128xbf16> to vector<16x128xbf16>
    %c0_2 = arith.constant 0 : index
    %c1 = arith.constant 1 : index
    %c0_3 = arith.constant 0 : index
    %2 = vector.load %arg1[%c0_2, %c1, %c0_3] : memref<1x18x128xbf16, #tpu.memory_space<vmem>>, vector<1x16x128xbf16>
    %3 = vector.shape_cast %2 : vector<1x16x128xbf16> to vector<16x128xbf16>
    %c0_4 = arith.constant 0 : index
    %c2 = arith.constant 2 : index
    %c0_5 = arith.constant 0 : index
    %4 = vector.load %arg1[%c0_4, %c2, %c0_5] : memref<1x18x128xbf16, #tpu.memory_space<vmem>>, vector<1x16x128xbf16>
    %5 = vector.shape_cast %4 : vector<1x16x128xbf16> to vector<16x128xbf16>
    %c0_6 = arith.constant 0 : index
    %c0_7 = arith.constant 0 : index
    %6 = vector.load %arg3[%c0_6, %c0_7] : memref<128x256xbf16, #tpu.memory_space<vmem>>, vector<128x256xbf16>
    %cst = arith.constant dense<0.000000e+00> : vector<16x256xf32>
    %7 = tpu.matmul %3, %6, %cst {dimension_numbers = #tpu.dot_dimension_numbers<[1], [0], [0], [1], [0, 0, 1, 1], [], []>} : vector<16x128xbf16>, vector<128x256xbf16>, vector<16x256xf32> -> vector<16x256xf32>
    %8 = vector.extract_strided_slice %7 {offsets = [0, 0], sizes = [16, 128], strides = [1, 1]} : vector<16x256xf32> to vector<16x128xf32>
    %c0_8 = arith.constant 0 : index
    %c0_9 = arith.constant 0 : index
    %c0_10 = arith.constant 0 : index
    %9 = vector.load %arg2[%c0_8, %c0_9, %c0_10] : memref<2x128x128xbf16, #tpu.memory_space<vmem>>, vector<1x128x128xbf16>
    %10 = vector.shape_cast %9 : vector<1x128x128xbf16> to vector<128x128xbf16>
    %cst_11 = arith.constant dense<0.000000e+00> : vector<16x128xf32>
    %11 = tpu.matmul %1, %10, %cst_11 {dimension_numbers = #tpu.dot_dimension_numbers<[1], [0], [0], [1], [0, 0, 1, 1], [], []>} : vector<16x128xbf16>, vector<128x128xbf16>, vector<16x128xf32> -> vector<16x128xf32>
    %12 = arith.addf %8, %11 : vector<16x128xf32>
    %c1_12 = arith.constant 1 : index
    %c0_13 = arith.constant 0 : index
    %c0_14 = arith.constant 0 : index
    %13 = vector.load %arg2[%c1_12, %c0_13, %c0_14] : memref<2x128x128xbf16, #tpu.memory_space<vmem>>, vector<1x128x128xbf16>
    %14 = vector.shape_cast %13 : vector<1x128x128xbf16> to vector<128x128xbf16>
    %cst_15 = arith.constant dense<0.000000e+00> : vector<16x128xf32>
    %15 = tpu.matmul %5, %14, %cst_15 {dimension_numbers = #tpu.dot_dimension_numbers<[1], [0], [0], [1], [0, 0, 1, 1], [], []>} : vector<16x128xbf16>, vector<128x128xbf16>, vector<16x128xf32> -> vector<16x128xf32>
    %16 = arith.addf %12, %15 : vector<16x128xf32>
    %cst_16 = arith.constant dense<0.000000e+00> : vector<128xf32>
    %17 = vector.multi_reduction <add>, %16, %cst_16 [0] : vector<16x128xf32> to vector<128xf32>
    %18 = vector.shape_cast %17 : vector<128xf32> to vector<1x128xf32>
    %c0_17 = arith.constant 0 : index
    %c0_18 = arith.constant 0 : index
    %c0_19 = arith.constant 0 : index
    %19 = vector.load %arg5[%c0_17, %c0_18, %c0_19] : memref<1x2x128xf32, #tpu.memory_space<vmem>>, vector<1x1x128xf32>
    %20 = vector.shape_cast %19 : vector<1x1x128xf32> to vector<1x128xf32>
    %21 = vector.shape_cast %18 : vector<1x128xf32> to vector<1x1x128xf32>
    tpu.vector_store %arg5[%c0_17, %c0_18, %c0_19], %21 {strides = array<i32>} : memref<1x2x128xf32, #tpu.memory_space<vmem>>, vector<1x1x128xf32>,
    %22 = arith.mulf %16, %16 : vector<16x128xf32>
    %cst_20 = arith.constant dense<0.000000e+00> : vector<128xf32>
    %23 = vector.multi_reduction <add>, %22, %cst_20 [0] : vector<16x128xf32> to vector<128xf32>
    %24 = vector.shape_cast %23 : vector<128xf32> to vector<1x128xf32>
    %c0_21 = arith.constant 0 : index
    %c1_22 = arith.constant 1 : index
    %c0_23 = arith.constant 0 : index
    %25 = vector.load %arg5[%c0_21, %c1_22, %c0_23] : memref<1x2x128xf32, #tpu.memory_space<vmem>>, vector<1x1x128xf32>
    %26 = vector.shape_cast %25 : vector<1x1x128xf32> to vector<1x128xf32>
    %27 = vector.shape_cast %24 : vector<1x128xf32> to vector<1x1x128xf32>
    tpu.vector_store %arg5[%c0_21, %c1_22, %c0_23], %27 {strides = array<i32>} : memref<1x2x128xf32, #tpu.memory_space<vmem>>, vector<1x1x128xf32>,
    %28 = vector.extract_strided_slice %7 {offsets = [0, 128], sizes = [16, 128], strides = [1, 1]} : vector<16x256xf32> to vector<16x128xf32>
    %cst_24 = arith.constant dense<0.000000e+00> : vector<128xf32>
    %29 = vector.multi_reduction <add>, %28, %cst_24 [0] : vector<16x128xf32> to vector<128xf32>
    %30 = vector.shape_cast %29 : vector<128xf32> to vector<1x128xf32>
    %c0_25 = arith.constant 0 : index
    %c0_26 = arith.constant 0 : index
    %c0_27 = arith.constant 0 : index
    %31 = vector.load %arg6[%c0_25, %c0_26, %c0_27] : memref<1x2x128xf32, #tpu.memory_space<vmem>>, vector<1x1x128xf32>
    %32 = vector.shape_cast %31 : vector<1x1x128xf32> to vector<1x128xf32>
    %33 = vector.shape_cast %30 : vector<1x128xf32> to vector<1x1x128xf32>
    tpu.vector_store %arg6[%c0_25, %c0_26, %c0_27], %33 {strides = array<i32>} : memref<1x2x128xf32, #tpu.memory_space<vmem>>, vector<1x1x128xf32>,
    %34 = arith.mulf %28, %28 : vector<16x128xf32>
    %cst_28 = arith.constant dense<0.000000e+00> : vector<128xf32>
    %35 = vector.multi_reduction <add>, %34, %cst_28 [0] : vector<16x128xf32> to vector<128xf32>
    %36 = vector.shape_cast %35 : vector<128xf32> to vector<1x128xf32>
    %c0_29 = arith.constant 0 : index
    %c1_30 = arith.constant 1 : index
    %c0_31 = arith.constant 0 : index
    %37 = vector.load %arg6[%c0_29, %c1_30, %c0_31] : memref<1x2x128xf32, #tpu.memory_space<vmem>>, vector<1x1x128xf32>
    %38 = vector.shape_cast %37 : vector<1x1x128xf32> to vector<1x128xf32>
    %39 = vector.shape_cast %36 : vector<1x128xf32> to vector<1x1x128xf32>
    tpu.vector_store %arg6[%c0_29, %c1_30, %c0_31], %39 {strides = array<i32>} : memref<1x2x128xf32, #tpu.memory_space<vmem>>, vector<1x1x128xf32>,
    %cst_32 = arith.constant 0.000000e+00 : bf16
    %40 = vector.broadcast %cst_32 : bf16 to vector<1x1x128xbf16>
    %c0_33 = arith.constant 0 : index
    %c0_34 = arith.constant 0 : index
    %c0_35 = arith.constant 0 : index
    %41 = vector.load %arg4[%c0_33, %c0_34, %c0_35] : memref<1x18x128xbf16, #tpu.memory_space<vmem>>, vector<1x1x128xbf16>
    tpu.vector_store %arg4[%c0_33, %c0_34, %c0_35], %40 {strides = array<i32>} : memref<1x18x128xbf16, #tpu.memory_space<vmem>>, vector<1x1x128xbf16>,
    %c0_36 = arith.constant 0 : index
    %c17 = arith.constant 17 : index
    %c0_37 = arith.constant 0 : index
    %42 = vector.load %arg4[%c0_36, %c17, %c0_37] : memref<1x18x128xbf16, #tpu.memory_space<vmem>>, vector<1x1x128xbf16>
    tpu.vector_store %arg4[%c0_36, %c17, %c0_37], %40 {strides = array<i32>} : memref<1x18x128xbf16, #tpu.memory_space<vmem>>, vector<1x1x128xbf16>,
    %43 = vector.shape_cast %16 : vector<16x128xf32> to vector<1x16x128xf32>
    %44 = arith.truncf %43 : vector<1x16x128xf32> to vector<1x16x128xbf16>
    %c0_38 = arith.constant 0 : index
    %c1_39 = arith.constant 1 : index
    %c0_40 = arith.constant 0 : index
    %45 = vector.load %arg4[%c0_38, %c1_39, %c0_40] : memref<1x18x128xbf16, #tpu.memory_space<vmem>>, vector<1x16x128xbf16>
    tpu.vector_store %arg4[%c0_38, %c1_39, %c0_40], %44 {strides = array<i32>} : memref<1x18x128xbf16, #tpu.memory_space<vmem>>, vector<1x16x128xbf16>,
    return
  }
  func.func @transform_0(%arg0: i32) -> (i32, i32, i32) {
    %c0_i32 = arith.constant 0 : i32
    %c0_i32_0 = arith.constant 0 : i32
    %c0_i32_1 = arith.constant 0 : i32
    return %arg0, %c0_i32, %c0_i32_0 : i32, i32, i32
  }
  func.func @transform_1(%arg0: i32) -> (i32, i32, i32) {
    %c0_i32 = arith.constant 0 : i32
    %c0_i32_0 = arith.constant 0 : i32
    %c0_i32_1 = arith.constant 0 : i32
    %c0_i32_2 = arith.constant 0 : i32
    return %c0_i32, %c0_i32_0, %c0_i32_1 : i32, i32, i32
  }
  func.func @transform_2(%arg0: i32) -> (i32, i32) {
    %c0_i32 = arith.constant 0 : i32
    %c0_i32_0 = arith.constant 0 : i32
    %c0_i32_1 = arith.constant 0 : i32
    return %c0_i32, %c0_i32_0 : i32, i32
  }
  func.func @transform_3(%arg0: i32) -> (i32, i32, i32) {
    %c0_i32 = arith.constant 0 : i32
    %c0_i32_0 = arith.constant 0 : i32
    %c0_i32_1 = arith.constant 0 : i32
    return %arg0, %c0_i32, %c0_i32_0 : i32, i32, i32
  }
  func.func @transform_4(%arg0: i32) -> (i32, i32, i32) {
    %c0_i32 = arith.constant 0 : i32
    %c0_i32_0 = arith.constant 0 : i32
    %c0_i32_1 = arith.constant 0 : i32
    return %arg0, %c0_i32, %c0_i32_0 : i32, i32, i32
  }
  func.func @transform_5(%arg0: i32) -> (i32, i32, i32) {
    %c0_i32 = arith.constant 0 : i32
    %c0_i32_0 = arith.constant 0 : i32
    %c0_i32_1 = arith.constant 0 : i32
    return %arg0, %c0_i32, %c0_i32_0 : i32, i32, i32
  }
}

module attributes {stable_mosaic.version = 11 : i64} {
  func.func @kernel(%arg0: i32, %arg1: memref<1x18x128xbf16, #tpu.memory_space<vmem>>, %arg2: memref<1x128xf32, #tpu.memory_space<vmem>>, %arg3: memref<1x128xf32, #tpu.memory_space<vmem>>, %arg4: memref<3x128x128xbf16, #tpu.memory_space<vmem>>, %arg5: memref<1x16x128xbf16, #tpu.memory_space<vmem>>, %arg6: memref<1x2x128xf32, #tpu.memory_space<vmem>>) attributes {dimension_semantics = [#tpu.dimension_semantics<parallel>], iteration_bounds = array<i64: 2>, scalar_prefetch = 0 : i64, scratch_operands = 0 : i64, tpu.core_type = #tpu.core_type<tc>, window_params = [{transform_indices = @transform_0, window_bounds = array<i64: 1, 18, 128>}, {pipeline_mode = #tpu.pipeline_mode<synchronous>, transform_indices = @transform_1, window_bounds = array<i64: 1, 128>}, {pipeline_mode = #tpu.pipeline_mode<synchronous>, transform_indices = @transform_2, window_bounds = array<i64: 1, 128>}, {pipeline_mode = #tpu.pipeline_mode<synchronous>, transform_indices = @transform_3, window_bounds = array<i64: 3, 128, 128>}, {transform_indices = @transform_4, window_bounds = array<i64: 1, 16, 128>}, {transform_indices = @transform_5, window_bounds = array<i64: 1, 2, 128>}]} {
    %c0 = arith.constant 0 : index
    %c0_0 = arith.constant 0 : index
    %c0_1 = arith.constant 0 : index
    %0 = vector.load %arg1[%c0, %c0_0, %c0_1] : memref<1x18x128xbf16, #tpu.memory_space<vmem>>, vector<1x18x128xbf16>
    %1 = arith.extf %0 : vector<1x18x128xbf16> to vector<1x18x128xf32>
    %2 = tpu.iota {dimensions = array<i32: 1>} : vector<1x18x128xi32>
    %c1_i32 = arith.constant 1 : i32
    %3 = vector.broadcast %c1_i32 : i32 to vector<1x18x128xi32>
    %4 = arith.cmpi sge, %2, %3 : vector<1x18x128xi32>
    %c16_i32 = arith.constant 16 : i32
    %5 = vector.broadcast %c16_i32 : i32 to vector<1x18x128xi32>
    %6 = arith.cmpi sle, %2, %5 : vector<1x18x128xi32>
    %7 = arith.andi %4, %6 : vector<1x18x128xi1>
    %c0_2 = arith.constant 0 : index
    %c0_3 = arith.constant 0 : index
    %8 = vector.load %arg2[%c0_2, %c0_3] : memref<1x128xf32, #tpu.memory_space<vmem>>, vector<1x128xf32>
    %9 = vector.shape_cast %8 : vector<1x128xf32> to vector<1x1x128xf32>
    %10 = vector.broadcast %9 : vector<1x1x128xf32> to vector<1x18x128xf32>
    %11 = arith.mulf %1, %10 : vector<1x18x128xf32>
    %c0_4 = arith.constant 0 : index
    %c0_5 = arith.constant 0 : index
    %12 = vector.load %arg3[%c0_4, %c0_5] : memref<1x128xf32, #tpu.memory_space<vmem>>, vector<1x128xf32>
    %13 = vector.shape_cast %12 : vector<1x128xf32> to vector<1x1x128xf32>
    %14 = vector.broadcast %13 : vector<1x1x128xf32> to vector<1x18x128xf32>
    %15 = arith.addf %11, %14 : vector<1x18x128xf32>
    %cst = arith.constant 0.000000e+00 : f32
    %16 = vector.broadcast %cst : f32 to vector<1x18x128xf32>
    %17 = arith.maximumf %15, %16 : vector<1x18x128xf32>
    %cst_6 = arith.constant 0.000000e+00 : f32
    %18 = vector.broadcast %cst_6 : f32 to vector<1x18x128xf32>
    %19 = arith.select %7, %17, %18 : vector<1x18x128xi1>, vector<1x18x128xf32>
    %20 = arith.truncf %19 : vector<1x18x128xf32> to vector<1x18x128xbf16>
    %21 = vector.extract_strided_slice %20 {offsets = [0, 0, 0], sizes = [1, 16, 128], strides = [1, 1, 1]} : vector<1x18x128xbf16> to vector<1x16x128xbf16>
    %22 = vector.shape_cast %21 : vector<1x16x128xbf16> to vector<16x128xbf16>
    %23 = vector.extract_strided_slice %20 {offsets = [0, 1, 0], sizes = [1, 16, 128], strides = [1, 1, 1]} : vector<1x18x128xbf16> to vector<1x16x128xbf16>
    %24 = vector.shape_cast %23 : vector<1x16x128xbf16> to vector<16x128xbf16>
    %25 = vector.extract_strided_slice %20 {offsets = [0, 2, 0], sizes = [1, 16, 128], strides = [1, 1, 1]} : vector<1x18x128xbf16> to vector<1x16x128xbf16>
    %26 = vector.shape_cast %25 : vector<1x16x128xbf16> to vector<16x128xbf16>
    %c1 = arith.constant 1 : index
    %c0_7 = arith.constant 0 : index
    %c0_8 = arith.constant 0 : index
    %27 = vector.load %arg4[%c1, %c0_7, %c0_8] : memref<3x128x128xbf16, #tpu.memory_space<vmem>>, vector<1x128x128xbf16>
    %28 = vector.shape_cast %27 : vector<1x128x128xbf16> to vector<128x128xbf16>
    %cst_9 = arith.constant dense<0.000000e+00> : vector<16x128xf32>
    %29 = tpu.matmul %24, %28, %cst_9 {dimension_numbers = #tpu.dot_dimension_numbers<[1], [0], [0], [1], [0, 0, 1, 1], [], []>} : vector<16x128xbf16>, vector<128x128xbf16>, vector<16x128xf32> -> vector<16x128xf32>
    %c0_10 = arith.constant 0 : index
    %c0_11 = arith.constant 0 : index
    %c0_12 = arith.constant 0 : index
    %30 = vector.load %arg4[%c0_10, %c0_11, %c0_12] : memref<3x128x128xbf16, #tpu.memory_space<vmem>>, vector<1x128x128xbf16>
    %31 = vector.shape_cast %30 : vector<1x128x128xbf16> to vector<128x128xbf16>
    %cst_13 = arith.constant dense<0.000000e+00> : vector<16x128xf32>
    %32 = tpu.matmul %22, %31, %cst_13 {dimension_numbers = #tpu.dot_dimension_numbers<[1], [0], [0], [1], [0, 0, 1, 1], [], []>} : vector<16x128xbf16>, vector<128x128xbf16>, vector<16x128xf32> -> vector<16x128xf32>
    %33 = arith.addf %29, %32 : vector<16x128xf32>
    %c2 = arith.constant 2 : index
    %c0_14 = arith.constant 0 : index
    %c0_15 = arith.constant 0 : index
    %34 = vector.load %arg4[%c2, %c0_14, %c0_15] : memref<3x128x128xbf16, #tpu.memory_space<vmem>>, vector<1x128x128xbf16>
    %35 = vector.shape_cast %34 : vector<1x128x128xbf16> to vector<128x128xbf16>
    %cst_16 = arith.constant dense<0.000000e+00> : vector<16x128xf32>
    %36 = tpu.matmul %26, %35, %cst_16 {dimension_numbers = #tpu.dot_dimension_numbers<[1], [0], [0], [1], [0, 0, 1, 1], [], []>} : vector<16x128xbf16>, vector<128x128xbf16>, vector<16x128xf32> -> vector<16x128xf32>
    %37 = arith.addf %33, %36 : vector<16x128xf32>
    %cst_17 = arith.constant dense<0.000000e+00> : vector<128xf32>
    %38 = vector.multi_reduction <add>, %37, %cst_17 [0] : vector<16x128xf32> to vector<128xf32>
    %39 = vector.shape_cast %38 : vector<128xf32> to vector<1x128xf32>
    %c0_18 = arith.constant 0 : index
    %c0_19 = arith.constant 0 : index
    %c0_20 = arith.constant 0 : index
    %40 = vector.load %arg6[%c0_18, %c0_19, %c0_20] : memref<1x2x128xf32, #tpu.memory_space<vmem>>, vector<1x1x128xf32>
    %41 = vector.shape_cast %40 : vector<1x1x128xf32> to vector<1x128xf32>
    %42 = vector.shape_cast %39 : vector<1x128xf32> to vector<1x1x128xf32>
    tpu.vector_store %arg6[%c0_18, %c0_19, %c0_20], %42 {strides = array<i32>} : memref<1x2x128xf32, #tpu.memory_space<vmem>>, vector<1x1x128xf32>,
    %43 = arith.mulf %37, %37 : vector<16x128xf32>
    %cst_21 = arith.constant dense<0.000000e+00> : vector<128xf32>
    %44 = vector.multi_reduction <add>, %43, %cst_21 [0] : vector<16x128xf32> to vector<128xf32>
    %45 = vector.shape_cast %44 : vector<128xf32> to vector<1x128xf32>
    %c0_22 = arith.constant 0 : index
    %c1_23 = arith.constant 1 : index
    %c0_24 = arith.constant 0 : index
    %46 = vector.load %arg6[%c0_22, %c1_23, %c0_24] : memref<1x2x128xf32, #tpu.memory_space<vmem>>, vector<1x1x128xf32>
    %47 = vector.shape_cast %46 : vector<1x1x128xf32> to vector<1x128xf32>
    %48 = vector.shape_cast %45 : vector<1x128xf32> to vector<1x1x128xf32>
    tpu.vector_store %arg6[%c0_22, %c1_23, %c0_24], %48 {strides = array<i32>} : memref<1x2x128xf32, #tpu.memory_space<vmem>>, vector<1x1x128xf32>,
    %49 = vector.shape_cast %37 : vector<16x128xf32> to vector<1x16x128xf32>
    %50 = arith.truncf %49 : vector<1x16x128xf32> to vector<1x16x128xbf16>
    %c0_25 = arith.constant 0 : index
    %c0_26 = arith.constant 0 : index
    %c0_27 = arith.constant 0 : index
    %51 = vector.load %arg5[%c0_25, %c0_26, %c0_27] : memref<1x16x128xbf16, #tpu.memory_space<vmem>>, vector<1x16x128xbf16>
    tpu.vector_store %arg5[%c0_25, %c0_26, %c0_27], %50 {strides = array<i32>} : memref<1x16x128xbf16, #tpu.memory_space<vmem>>, vector<1x16x128xbf16>,
    return
  }
  func.func @transform_0(%arg0: i32) -> (i32, i32, i32) {
    %c0_i32 = arith.constant 0 : i32
    %c0_i32_0 = arith.constant 0 : i32
    %c0_i32_1 = arith.constant 0 : i32
    return %arg0, %c0_i32, %c0_i32_0 : i32, i32, i32
  }
  func.func @transform_1(%arg0: i32) -> (i32, i32) {
    %c0_i32 = arith.constant 0 : i32
    %c0_i32_0 = arith.constant 0 : i32
    %c0_i32_1 = arith.constant 0 : i32
    return %c0_i32, %c0_i32_0 : i32, i32
  }
  func.func @transform_2(%arg0: i32) -> (i32, i32) {
    %c0_i32 = arith.constant 0 : i32
    %c0_i32_0 = arith.constant 0 : i32
    %c0_i32_1 = arith.constant 0 : i32
    return %c0_i32, %c0_i32_0 : i32, i32
  }
  func.func @transform_3(%arg0: i32) -> (i32, i32, i32) {
    %c0_i32 = arith.constant 0 : i32
    %c0_i32_0 = arith.constant 0 : i32
    %c0_i32_1 = arith.constant 0 : i32
    %c0_i32_2 = arith.constant 0 : i32
    return %c0_i32, %c0_i32_0, %c0_i32_1 : i32, i32, i32
  }
  func.func @transform_4(%arg0: i32) -> (i32, i32, i32) {
    %c0_i32 = arith.constant 0 : i32
    %c0_i32_0 = arith.constant 0 : i32
    %c0_i32_1 = arith.constant 0 : i32
    return %arg0, %c0_i32, %c0_i32_0 : i32, i32, i32
  }
  func.func @transform_5(%arg0: i32) -> (i32, i32, i32) {
    %c0_i32 = arith.constant 0 : i32
    %c0_i32_0 = arith.constant 0 : i32
    %c0_i32_1 = arith.constant 0 : i32
    return %arg0, %c0_i32, %c0_i32_0 : i32, i32, i32
  }
}

module attributes {stable_mosaic.version = 11 : i64} {
  func.func @kernel(%arg0: i32, %arg1: memref<1x16x128xbf16, #tpu.memory_space<vmem>>, %arg2: memref<1x18x128xbf16, #tpu.memory_space<vmem>>, %arg3: memref<128x128xbf16, #tpu.memory_space<vmem>>, %arg4: memref<1x128xf32, #tpu.memory_space<vmem>>, %arg5: memref<1x128xf32, #tpu.memory_space<vmem>>, %arg6: memref<1x128xf32, #tpu.memory_space<vmem>>, %arg7: memref<1x128xf32, #tpu.memory_space<vmem>>, %arg8: memref<1x16x128xbf16, #tpu.memory_space<vmem>>) attributes {dimension_semantics = [#tpu.dimension_semantics<parallel>], iteration_bounds = array<i64: 2>, scalar_prefetch = 0 : i64, scratch_operands = 0 : i64, tpu.core_type = #tpu.core_type<tc>, window_params = [{transform_indices = @transform_0, window_bounds = array<i64: 1, 16, 128>}, {transform_indices = @transform_1, window_bounds = array<i64: 1, 18, 128>}, {pipeline_mode = #tpu.pipeline_mode<synchronous>, transform_indices = @transform_2, window_bounds = array<i64: 128, 128>}, {pipeline_mode = #tpu.pipeline_mode<synchronous>, transform_indices = @transform_3, window_bounds = array<i64: 1, 128>}, {pipeline_mode = #tpu.pipeline_mode<synchronous>, transform_indices = @transform_4, window_bounds = array<i64: 1, 128>}, {pipeline_mode = #tpu.pipeline_mode<synchronous>, transform_indices = @transform_5, window_bounds = array<i64: 1, 128>}, {pipeline_mode = #tpu.pipeline_mode<synchronous>, transform_indices = @transform_6, window_bounds = array<i64: 1, 128>}, {transform_indices = @transform_7, window_bounds = array<i64: 1, 16, 128>}]} {
    %c0 = arith.constant 0 : index
    %c1 = arith.constant 1 : index
    %c0_0 = arith.constant 0 : index
    %0 = vector.load %arg2[%c0, %c1, %c0_0] : memref<1x18x128xbf16, #tpu.memory_space<vmem>>, vector<1x16x128xbf16>
    %1 = vector.shape_cast %0 : vector<1x16x128xbf16> to vector<16x128xbf16>
    %c0_1 = arith.constant 0 : index
    %c0_2 = arith.constant 0 : index
    %2 = vector.load %arg3[%c0_1, %c0_2] : memref<128x128xbf16, #tpu.memory_space<vmem>>, vector<128x128xbf16>
    %cst = arith.constant dense<0.000000e+00> : vector<16x128xf32>
    %3 = tpu.matmul %1, %2, %cst {dimension_numbers = #tpu.dot_dimension_numbers<[1], [0], [0], [1], [0, 0, 1, 1], [], []>} : vector<16x128xbf16>, vector<128x128xbf16>, vector<16x128xf32> -> vector<16x128xf32>
    %4 = vector.shape_cast %3 : vector<16x128xf32> to vector<1x16x128xf32>
    %c0_3 = arith.constant 0 : index
    %c0_4 = arith.constant 0 : index
    %c0_5 = arith.constant 0 : index
    %5 = vector.load %arg1[%c0_3, %c0_4, %c0_5] : memref<1x16x128xbf16, #tpu.memory_space<vmem>>, vector<1x16x128xbf16>
    %6 = arith.extf %5 : vector<1x16x128xbf16> to vector<1x16x128xf32>
    %c0_6 = arith.constant 0 : index
    %c0_7 = arith.constant 0 : index
    %7 = vector.load %arg4[%c0_6, %c0_7] : memref<1x128xf32, #tpu.memory_space<vmem>>, vector<1x128xf32>
    %8 = vector.shape_cast %7 : vector<1x128xf32> to vector<1x1x128xf32>
    %9 = vector.broadcast %8 : vector<1x1x128xf32> to vector<1x16x128xf32>
    %10 = arith.mulf %6, %9 : vector<1x16x128xf32>
    %c0_8 = arith.constant 0 : index
    %c0_9 = arith.constant 0 : index
    %11 = vector.load %arg5[%c0_8, %c0_9] : memref<1x128xf32, #tpu.memory_space<vmem>>, vector<1x128xf32>
    %12 = vector.shape_cast %11 : vector<1x128xf32> to vector<1x1x128xf32>
    %13 = vector.broadcast %12 : vector<1x1x128xf32> to vector<1x16x128xf32>
    %14 = arith.addf %10, %13 : vector<1x16x128xf32>
    %c0_10 = arith.constant 0 : index
    %c0_11 = arith.constant 0 : index
    %15 = vector.load %arg6[%c0_10, %c0_11] : memref<1x128xf32, #tpu.memory_space<vmem>>, vector<1x128xf32>
    %16 = vector.shape_cast %15 : vector<1x128xf32> to vector<1x1x128xf32>
    %17 = vector.broadcast %16 : vector<1x1x128xf32> to vector<1x16x128xf32>
    %18 = arith.mulf %4, %17 : vector<1x16x128xf32>
    %c0_12 = arith.constant 0 : index
    %c0_13 = arith.constant 0 : index
    %19 = vector.load %arg7[%c0_12, %c0_13] : memref<1x128xf32, #tpu.memory_space<vmem>>, vector<1x128xf32>
    %20 = vector.shape_cast %19 : vector<1x128xf32> to vector<1x1x128xf32>
    %21 = vector.broadcast %20 : vector<1x1x128xf32> to vector<1x16x128xf32>
    %22 = arith.addf %18, %21 : vector<1x16x128xf32>
    %23 = arith.addf %14, %22 : vector<1x16x128xf32>
    %cst_14 = arith.constant 0.000000e+00 : f32
    %24 = vector.broadcast %cst_14 : f32 to vector<1x16x128xf32>
    %25 = arith.maximumf %23, %24 : vector<1x16x128xf32>
    %26 = arith.truncf %25 : vector<1x16x128xf32> to vector<1x16x128xbf16>
    %c0_15 = arith.constant 0 : index
    %c0_16 = arith.constant 0 : index
    %c0_17 = arith.constant 0 : index
    %27 = vector.load %arg8[%c0_15, %c0_16, %c0_17] : memref<1x16x128xbf16, #tpu.memory_space<vmem>>, vector<1x16x128xbf16>
    tpu.vector_store %arg8[%c0_15, %c0_16, %c0_17], %26 {strides = array<i32>} : memref<1x16x128xbf16, #tpu.memory_space<vmem>>, vector<1x16x128xbf16>,
    return
  }
  func.func @transform_0(%arg0: i32) -> (i32, i32, i32) {
    %c0_i32 = arith.constant 0 : i32
    %c0_i32_0 = arith.constant 0 : i32
    %c0_i32_1 = arith.constant 0 : i32
    return %arg0, %c0_i32, %c0_i32_0 : i32, i32, i32
  }
  func.func @transform_1(%arg0: i32) -> (i32, i32, i32) {
    %c0_i32 = arith.constant 0 : i32
    %c0_i32_0 = arith.constant 0 : i32
    %c0_i32_1 = arith.constant 0 : i32
    return %arg0, %c0_i32, %c0_i32_0 : i32, i32, i32
  }
  func.func @transform_2(%arg0: i32) -> (i32, i32) {
    %c0_i32 = arith.constant 0 : i32
    %c0_i32_0 = arith.constant 0 : i32
    %c0_i32_1 = arith.constant 0 : i32
    return %c0_i32, %c0_i32_0 : i32, i32
  }
  func.func @transform_3(%arg0: i32) -> (i32, i32) {
    %c0_i32 = arith.constant 0 : i32
    %c0_i32_0 = arith.constant 0 : i32
    %c0_i32_1 = arith.constant 0 : i32
    return %c0_i32, %c0_i32_0 : i32, i32
  }
  func.func @transform_4(%arg0: i32) -> (i32, i32) {
    %c0_i32 = arith.constant 0 : i32
    %c0_i32_0 = arith.constant 0 : i32
    %c0_i32_1 = arith.constant 0 : i32
    return %c0_i32, %c0_i32_0 : i32, i32
  }
  func.func @transform_5(%arg0: i32) -> (i32, i32) {
    %c0_i32 = arith.constant 0 : i32
    %c0_i32_0 = arith.constant 0 : i32
    %c0_i32_1 = arith.constant 0 : i32
    return %c0_i32, %c0_i32_0 : i32, i32
  }
  func.func @transform_6(%arg0: i32) -> (i32, i32) {
    %c0_i32 = arith.constant 0 : i32
    %c0_i32_0 = arith.constant 0 : i32
    %c0_i32_1 = arith.constant 0 : i32
    return %c0_i32, %c0_i32_0 : i32, i32
  }
  func.func @transform_7(%arg0: i32) -> (i32, i32, i32) {
    %c0_i32 = arith.constant 0 : i32
    %c0_i32_0 = arith.constant 0 : i32
    %c0_i32_1 = arith.constant 0 : i32
    return %arg0, %c0_i32, %c0_i32_0 : i32, i32, i32
  }
}

</mosaic_0001>

<llo_original>
// kernel: _lambda_.3
$region0: #{_lambda_.3}
  #allocation0 [shape = 'u32[]', space=smem, size = 0x4, offset = 0x4, fixed_abs, tag = 'smem constant byte address 0x4 - core index']
  #allocation1 [shape = 'u32[144,128]{1,0:T(1,128)}', space=vmem, size = 0x12000, scoped, tag = 'internal scratch']
  %s0 = inlined_call_operand.vmem [shape: bf16[2,18,128], index: 0, kind: input, shape index: {}]
  %s1 = inlined_call_operand.vmem [shape: bf16[2,128,128], index: 1, kind: input, shape index: {}]
  %s2 = inlined_call_operand.vmem [shape: bf16[128,256], index: 2, kind: input, shape index: {}]
  %s3 = inlined_call_operand.vmem [shape: bf16[2,18,128], index: 3, kind: output, shape index: {0}]
  %s4 = inlined_call_operand.vmem [shape: f32[2,2,128], index: 4, kind: output, shape index: {1}]
  %s5 = inlined_call_operand.vmem [shape: f32[2,2,128], index: 5, kind: output, shape index: {2}]
  %6 = xla_tuple %s3, %s4, %s5
  %s7 = sld [smem:[#allocation0]]
  $region61: #{_lambda_.3} parent=0
    _
  %s9 = ssub.s32 1, %s7
  %s10 = scalar_select 0, %s9, %s7
  loop: start=0, step=1, limit=4
  $region2: #{_lambda_.3} parent=0 // loop_pre_header
    _
  $region3: #{_lambda_.3} parent=0 // loop_header
    %s12 = sphi 0, %s16
    %p13 = scmp.ge.s32.totalorder %s12, 4
    %s22 = sphi 0, %s24
    %s25 = sphi 0, %s22
    %s26 = sphi 0, %s25
    %s42 = sphi 0, %s26
    %s46 = sphi 0, %s46
    %s48 = sphi 0, %s46
    %s49 = sphi 0, %s48
    %s63 = sphi 0, %s49
    %s67 = sphi 0, %s67
    %s69 = sphi 0, %s67
    %s70 = sphi 0, %s69
    %s84 = sphi 0, %s70
    %s90 = sphi 0, %s92
    %s93 = sphi 0, %s90
    %s94 = sphi 0, %s93
    %s110 = sphi 0, %s94
    %s116 = sphi 0, %s118
    %s119 = sphi 0, %s116
    %s120 = sphi 0, %s119
    %s136 = sphi 0, %s120
    %s142 = sphi 0, %s144
    %s145 = sphi 0, %s142
    %s146 = sphi 0, %s145
    %s162 = sphi 0, %s146
  $region4: #{_lambda_.3} parent=0 // loop_header_branch
    %15 = sbr.rel (%p13) target = $region8
  $region5: #{_lambda_.3} parent=0 // loop_body
    %s17 = ssub.s32 %s12, 1
    %s18 = ssub.s32 %s12, 2
    %s19 = sadd.s32 %s12, 1
    %s20 = ssub.s32 %s12, %s19
    %p21 = scmp.eq.s32.totalorder %s20, 0
    %s23 = sadd.s32 %s22, 1
    %s24 = scalar_select %p21, %s22, %s23
    %p27 = pneg %p21
    %p28 = scmp.eq.s32.totalorder %s12, 1
    %p29 = por %p27, %p28
    %p30 = scmp.ne.s32.totalorder %s22, %s25
    %p31 = scmp.eq.s32.totalorder %s12, 0
    %p32 = por %p30, %p31
    %p33 = scmp.ne.s32.totalorder %s22, %s25
    %p34 = scmp.eq.s32.totalorder %s17, 1
    %p35 = por %p33, %p34
    %p36 = scmp.ne.s32.totalorder %s25, %s26
    %p37 = scmp.eq.s32.totalorder %s17, 0
    %p38 = por %p36, %p37
    %p39 = scmp.ne.s32.totalorder %s25, %s26
    %p40 = scmp.eq.s32.totalorder %s18, 1
    %p41 = por %p39, %p40
    %p43 = scmp.ne.s32.totalorder %s26, %s42
    %p44 = scmp.eq.s32.totalorder %s18, 0
    %p45 = por %p43, %p44
    %s47 = sadd.s32 %s46, 1
    %p50 = scmp.eq.s32.totalorder %s12, 1
    %p51 = scmp.ne.s32.totalorder %s46, %s48
    %p52 = scmp.eq.s32.totalorder %s12, 0
    %p53 = por %p51, %p52
    %p54 = scmp.ne.s32.totalorder %s46, %s48
    %p55 = scmp.eq.s32.totalorder %s17, 1
    %p56 = por %p54, %p55
    %p57 = scmp.ne.s32.totalorder %s48, %s49
    %p58 = scmp.eq.s32.totalorder %s17, 0
    %p59 = por %p57, %p58
    %p60 = scmp.ne.s32.totalorder %s48, %s49
    %p61 = scmp.eq.s32.totalorder %s18, 1
    %p62 = por %p60, %p61
    %p64 = scmp.ne.s32.totalorder %s49, %s63
    %p65 = scmp.eq.s32.totalorder %s18, 0
    %p66 = por %p64, %p65
    %s68 = sadd.s32 %s67, 1
    %p71 = scmp.eq.s32.totalorder %s12, 1
    %p72 = scmp.ne.s32.totalorder %s67, %s69
    %p73 = scmp.eq.s32.totalorder %s12, 0
    %p74 = por %p72, %p73
    %p75 = scmp.ne.s32.totalorder %s67, %s69
    %p76 = scmp.eq.s32.totalorder %s17, 1
    %p77 = por %p75, %p76
    %p78 = scmp.ne.s32.totalorder %s69, %s70
    %p79 = scmp.eq.s32.totalorder %s17, 0
    %p80 = por %p78, %p79
    %p81 = scmp.ne.s32.totalorder %s69, %s70
    %p82 = scmp.eq.s32.totalorder %s18, 1
    %p83 = por %p81, %p82
    %p85 = scmp.ne.s32.totalorder %s70, %s84
    %p86 = scmp.eq.s32.totalorder %s18, 0
    %p87 = por %p85, %p86
    %s88 = ssub.s32 %s12, %s19
    %p89 = scmp.eq.s32.totalorder %s88, 0
    %s91 = sadd.s32 %s90, 1
    %s92 = scalar_select %p89, %s90, %s91
    %p95 = pneg %p89
    %p96 = scmp.eq.s32.totalorder %s12, 1
    %p97 = por %p95, %p96
    %p98 = scmp.ne.s32.totalorder %s90, %s93
    %p99 = scmp.eq.s32.totalorder %s12, 0
    %p100 = por %p98, %p99
    %p101 = scmp.ne.s32.totalorder %s90, %s93
    %p102 = scmp.eq.s32.totalorder %s17, 1
    %p103 = por %p101, %p102
    %p104 = scmp.ne.s32.totalorder %s93, %s94
    %p105 = scmp.eq.s32.totalorder %s17, 0
    %p106 = por %p104, %p105
    %p107 = scmp.ne.s32.totalorder %s93, %s94
    %p108 = scmp.eq.s32.totalorder %s18, 1
    %p109 = por %p107, %p108
    %p111 = scmp.ne.s32.totalorder %s94, %s110
    %p112 = scmp.eq.s32.totalorder %s18, 0
    %p113 = por %p111, %p112
    %s114 = ssub.s32 %s12, %s19
    %p115 = scmp.eq.s32.totalorder %s114, 0
    %s117 = sadd.s32 %s116, 1
    %s118 = scalar_select %p115, %s116, %s117
    %p121 = pneg %p115
    %p122 = scmp.eq.s32.totalorder %s12, 1
    %p123 = por %p121, %p122
    %p124 = scmp.ne.s32.totalorder %s116, %s119
    %p125 = scmp.eq.s32.totalorder %s12, 0
    %p126 = por %p124, %p125
    %p127 = scmp.ne.s32.totalorder %s116, %s119
    %p128 = scmp.eq.s32.totalorder %s17, 1
    %p129 = por %p127, %p128
    %p130 = scmp.ne.s32.totalorder %s119, %s120
    %p131 = scmp.eq.s32.totalorder %s17, 0
    %p132 = por %p130, %p131
    %p133 = scmp.ne.s32.totalorder %s119, %s120
    %p134 = scmp.eq.s32.totalorder %s18, 1
    %p135 = por %p133, %p134
    %p137 = scmp.ne.s32.totalorder %s120, %s136
    %p138 = scmp.eq.s32.totalorder %s18, 0
    %p139 = por %p137, %p138
    %s140 = ssub.s32 %s12, %s19
    %p141 = scmp.eq.s32.totalorder %s140, 0
    %s143 = sadd.s32 %s142, 1
    %s144 = scalar_select %p141, %s142, %s143
    %p147 = pneg %p141
    %p148 = scmp.eq.s32.totalorder %s12, 1
    %p149 = por %p147, %p148
    %p150 = scmp.ne.s32.totalorder %s142, %s145
    %p151 = scmp.eq.s32.totalorder %s12, 0
    %p152 = por %p150, %p151
    %p153 = scmp.ne.s32.totalorder %s142, %s145
    %p154 = scmp.eq.s32.totalorder %s17, 1
    %p155 = por %p153, %p154
    %p156 = scmp.ne.s32.totalorder %s145, %s146
    %p157 = scmp.eq.s32.totalorder %s17, 0
    %p158 = por %p156, %p157
    %p159 = scmp.ne.s32.totalorder %s145, %s146
    %p160 = scmp.eq.s32.totalorder %s18, 1
    %p161 = por %p159, %p160
    %p163 = scmp.ne.s32.totalorder %s146, %s162
    %p164 = scmp.eq.s32.totalorder %s18, 0
    %p165 = por %p163, %p164
    %p166 = scmp.le.s32.totalorder 1, %s12
    %p167 = scmp.lt.s32.totalorder %s12, 3
    %p168 = pnand %p166, %p167
    %p169 = pneg %p168
    // Predicated region
    $region9: #{_lambda_.3} parent=5 // pred_check
      _
    $region10: #{_lambda_.3} parent=5 // pred_check_branch
      %171 = sbr.rel (%p168) target = $region12
    $region11: #{_lambda_.3} parent=5 // pred_region
      %s172 = ssub.s32 %s12, 1
      // Predicated region
      $region13: #{_lambda_.3} parent=11 // pred_check
        %p173 = pneg %p59
      $region14: #{_lambda_.3} parent=11 // pred_check_branch
        %175 = sbr.rel (%p173) target = $region16
      $region15: #{_lambda_.3} parent=11 // pred_region
        _
      $region16: #{_lambda_.3} parent=11 // pred_fallthru
        _
      // Predicated region
      $region17: #{_lambda_.3} parent=11 // pred_check
        %p176 = pneg %p80
      $region18: #{_lambda_.3} parent=11 // pred_check_branch
        %178 = sbr.rel (%p176) target = $region20
      $region19: #{_lambda_.3} parent=11 // pred_region
        _
      $region20: #{_lambda_.3} parent=11 // pred_fallthru
        _
    $region12: #{_lambda_.3} parent=5 // pred_fallthru
      _
    %p179 = scmp.lt.s32.totalorder %s12, 2
    // Predicated region
    $region21: #{_lambda_.3} parent=5 // pred_check
      %p180 = pneg %p179
    $region22: #{_lambda_.3} parent=5 // pred_check_branch
      %182 = sbr.rel (%p180) target = $region24
    $region23: #{_lambda_.3} parent=5 // pred_region
      // Predicated region
      $region25: #{_lambda_.3} parent=23 // pred_check
        %p183 = pneg %p32
      $region26: #{_lambda_.3} parent=23 // pred_check_branch
        %185 = sbr.rel (%p183) target = $region28
      $region27: #{_lambda_.3} parent=23 // pred_region
        %p186 = scmp.lt.s32.totalorder %s12, 1
        %s187 = scalar_select %p186, %s12, 1
        %s188 = smul.addr %s187, 3
        %s189 = smul.addr %s188, 4
        %s190 = scalar_lea.vmem %s0, %s189
      $region28: #{_lambda_.3} parent=23 // pred_fallthru
        _
    $region24: #{_lambda_.3} parent=5 // pred_fallthru
      _
    %p191 = scmp.le.s32.totalorder 1, %s12
    %p192 = scmp.lt.s32.totalorder %s12, 3
    %p193 = pnand %p191, %p192
    %p194 = pneg %p193
    // Predicated region
    $region29: #{_lambda_.3} parent=5 // pred_check
      _
    $region30: #{_lambda_.3} parent=5 // pred_check_branch
      %196 = sbr.rel (%p193) target = $region32
    $region31: #{_lambda_.3} parent=5 // pred_region
      %s197 = ssub.s32 %s12, 1
      %p198 = scmp.lt.s32.totalorder %s17, 1
      %s199 = scalar_select %p198, %s17, 1
      %s200 = smul.addr %s199, 3
      %s201 = smul.addr %s200, 4
      %s202 = scalar_lea.vmem %s0, %s201
      %p203 = pneg %p38
      %p204 = pneg %p35
      %p205 = pneg %p59
      %p206 = pneg %p56
      %p207 = pneg %p80
      %p208 = pneg %p77
      %p209 = pneg %p106
      %p210 = pneg %p103
      %p211 = scmp.lt.s32.totalorder %s17, 1
      %s212 = scalar_select %p211, %s17, 1
      %s213 = smul.addr %s212, 3
      %s214 = smul.addr %s213, 4
      %s215 = scalar_lea.vmem %s3, %s214
      %p216 = pneg %p132
      %p217 = pneg %p129
      %p218 = scmp.lt.s32.totalorder %s17, 1
      %s219 = scalar_select %p218, %s17, 1
      %s220 = smul.addr %s219, 2
      %s221 = scalar_lea.vmem %s4, %s220
      %p222 = pneg %p158
      %p223 = pneg %p155
      %p224 = scmp.lt.s32.totalorder %s17, 1
      %s225 = scalar_select %p224, %s17, 1
      %s226 = smul.addr %s225, 2
      %s227 = scalar_lea.vmem %s5, %s226
      %p228 = scmp.lt.s32.totalorder %s17, 1
      %s229 = scalar_select %p228, %s17, 1
      %s230 = smul.addr %s229, 3
      %s231 = smul.addr %s230, 4
      %s232 = scalar_lea.vmem %s0, %s231
      %p233 = scmp.lt.s32.totalorder %s17, 1
      %s234 = scalar_select %p233, %s17, 1
      %s235 = smul.addr %s234, 3
      %s236 = smul.addr %s235, 4
      %s237 = scalar_lea.vmem %s3, %s236
      %p238 = scmp.lt.s32.totalorder %s17, 1
      %s239 = scalar_select %p238, %s17, 1
      %s240 = smul.addr %s239, 2
      %s241 = scalar_lea.vmem %s4, %s240
      %p242 = scmp.lt.s32.totalorder %s17, 1
      %s243 = scalar_select %p242, %s17, 1
      %s244 = smul.addr %s243, 2
      %s245 = scalar_lea.vmem %s5, %s244
      %v247 = vld [vmem:[%s232] sm:$0xf]
      %v248 = vld [vmem:[%s232 + $0x4] sm:$0xf]
      %v249 = vld [vmem:[%s232 + $0x8] sm:$0x1]
      %v250 = vld [vmem:[%s232] sm:$0xe]
      %v251 = vld [vmem:[%s2] sm:$0xff]
      %v252 = vld [vmem:[%s2 + $0x8] sm:$0xff]
      %v253 = vld [vmem:[%s2 + $0x10] sm:$0xff]
      %v254 = vld [vmem:[%s2 + $0x18] sm:$0xff]
      %v255 = vld [vmem:[%s2 + $0x20] sm:$0xff]
      %v256 = vld [vmem:[%s2 + $0x28] sm:$0xff]
      %v257 = vld [vmem:[%s2 + $0x30] sm:$0xff]
      %v258 = vld [vmem:[%s2 + $0x38] sm:$0xff]
      %v259 = vld [vmem:[%s2 + $0x40] sm:$0xff]
      %v260 = vld [vmem:[%s2 + $0x48] sm:$0xff]
      %v261 = vld [vmem:[%s2 + $0x50] sm:$0xff]
      %v262 = vld [vmem:[%s2 + $0x58] sm:$0xff]
      %v263 = vld [vmem:[%s2 + $0x60] sm:$0xff]
      %v264 = vld [vmem:[%s2 + $0x68] sm:$0xff]
      %v265 = vld [vmem:[%s2 + $0x70] sm:$0xff]
      %v266 = vld [vmem:[%s2 + $0x78] sm:$0xff]
      %v270 = vunpack.c.l.b16 %v247
      %v271 = vunpack.c.l.b16 %v248
      %v272 = vunpack.c.l.b16 %v249
      %v273 = vpack.c.b16 %v271, %v270
      %v274 = vpack.c.b16 %v272, %v272
      %vm275 = vsmask.f32 7424
      %v277 = vshrl.u32 %v273, 16
      %v279 = vshll.u32 %v273, 16
      %v281 = vrot.slane %v279, 1
      %v282 = vor.u32 %v277, %v281
      %v284 = vshll.u32 %v274, 16
      %v286 = vrot.slane %v284, 1
      %v287 = vsel %vm275, %v282, %v286
      %v305 = vunpack.c.l.b16 %v251
      %v306 = vunpack.c.h.b16 %v251
      %v307 = vunpack.c.l.b16 %v252
      %v308 = vunpack.c.h.b16 %v252
      %v309 = vunpack.c.l.b16 %v253
      %v310 = vunpack.c.h.b16 %v253
      %v311 = vunpack.c.l.b16 %v254
      %v312 = vunpack.c.h.b16 %v254
      %v313 = vunpack.c.l.b16 %v255
      %v314 = vunpack.c.h.b16 %v255
      %v315 = vunpack.c.l.b16 %v256
      %v316 = vunpack.c.h.b16 %v256
      %v317 = vunpack.c.l.b16 %v257
      %v318 = vunpack.c.h.b16 %v257
      %v319 = vunpack.c.l.b16 %v258
      %v320 = vunpack.c.h.b16 %v258
      %v321 = vunpack.c.l.b16 %v259
      %v322 = vunpack.c.h.b16 %v259
      %v323 = vunpack.c.l.b16 %v260
      %v324 = vunpack.c.h.b16 %v260
      %v325 = vunpack.c.l.b16 %v261
      %v326 = vunpack.c.h.b16 %v261
      %v327 = vunpack.c.l.b16 %v262
      %v328 = vunpack.c.h.b16 %v262
      %v329 = vunpack.c.l.b16 %v263
      %v330 = vunpack.c.h.b16 %v263
      %v331 = vunpack.c.l.b16 %v264
      %v332 = vunpack.c.h.b16 %v264
      %v333 = vunpack.c.l.b16 %v265
      %v334 = vunpack.c.h.b16 %v265
      %v335 = vunpack.c.l.b16 %v266
      %v336 = vunpack.c.h.b16 %v266
      %v337 = vpack.c.b16 %v307, %v305
      %v338 = vpack.c.b16 %v308, %v306
      %v339 = vpack.c.b16 %v311, %v309
      %v340 = vpack.c.b16 %v312, %v310
      %v341 = vpack.c.b16 %v315, %v313
      %v342 = vpack.c.b16 %v316, %v314
      %v343 = vpack.c.b16 %v319, %v317
      %v344 = vpack.c.b16 %v320, %v318
      %v345 = vpack.c.b16 %v323, %v321
      %v346 = vpack.c.b16 %v324, %v322
      %v347 = vpack.c.b16 %v327, %v325
      %v348 = vpack.c.b16 %v328, %v326
      %v349 = vpack.c.b16 %v331, %v329
      %v350 = vpack.c.b16 %v332, %v330
      %v351 = vpack.c.b16 %v335, %v333
      %v352 = vpack.c.b16 %v336, %v334
      %369 = vmatprep.subr.bf16.mxu0 %v338
      %370 = vmatpush1.bf16.msra.mxu0 %v337
      %371 = vmatprep.subr.bf16.mxu0 %v340
      %372 = vmatpush1.bf16.msra.mxu0 %v339
      %373 = vmatprep.subr.bf16.mxu0 %v342
      %374 = vmatpush1.bf16.msra.mxu0 %v341
      %375 = vmatprep.subr.bf16.mxu0 %v344
      %376 = vmatpush1.bf16.msra.mxu0 %v343
      %377 = vmatprep.subr.bf16.mxu0 %v346
      %378 = vmatpush1.bf16.msra.mxu0 %v345
      %379 = vmatprep.subr.bf16.mxu0 %v348
      %380 = vmatpush1.bf16.msra.mxu0 %v347
      %381 = vmatprep.subr.bf16.mxu0 %v350
      %382 = vmatpush1.bf16.msra.mxu0 %v349
      %383 = vmatprep.subr.bf16.mxu0 %v352
      %384 = vmatpush1.bf16.msra.mxu0 %v351
      %385 = vmatprep.subr.bf16.mxu0 0
      %386 = vmatpush1.bf16.msra.mxu0 0
      %387 = vmatprep.subr.bf16.mxu0 0
      %388 = vmatpush1.bf16.msra.mxu0 0
      %389 = vmatprep.subr.bf16.mxu0 0
      %390 = vmatpush1.bf16.msra.mxu0 0
      %391 = vmatprep.subr.bf16.mxu0 0
      %392 = vmatpush1.bf16.msra.mxu0 0
      %393 = vmatprep.subr.bf16.mxu0 0
      %394 = vmatpush1.bf16.msra.mxu0 0
      %395 = vmatprep.subr.bf16.mxu0 0
      %396 = vmatpush1.bf16.msra.mxu0 0
      %397 = vmatprep.subr.bf16.mxu0 0
      %398 = vmatpush1.bf16.msra.mxu0 0
      %399 = vmatprep.subr.bf16.mxu0 0
      %400 = vmatpush1.bf16.msra.mxu0 0
      %401 = vmatprep.mubr.bf16.mxu0 0
      %402 = vmatmul.mubr.bf16.gmra.mrb[0].mxu0 %v287
      %v403 = vpop.f32.mrb[0].mxu0
      %v404 = vadd.f32 0.0, %v403
      %v405 = vpop.f32.mrb[0].mxu0
      %v406 = vadd.f32 0.0, %v405
      %v407 = vpop.f32.mrb[0].mxu0
      %v408 = vadd.f32 0.0, %v407
      %v409 = vpop.f32.mrb[0].mxu0
      %v410 = vadd.f32 0.0, %v409
      %411 = vdwg.mxu0
      %v412 = vld [vmem:[%s1] sm:$0xf]
      %v413 = vld [vmem:[%s1 + $0x4] sm:$0xf]
      %v414 = vld [vmem:[%s1 + $0x8] sm:$0xf]
      %v415 = vld [vmem:[%s1 + $0xc] sm:$0xf]
      %v416 = vld [vmem:[%s1 + $0x10] sm:$0xf]
      %v417 = vld [vmem:[%s1 + $0x14] sm:$0xf]
      %v418 = vld [vmem:[%s1 + $0x18] sm:$0xf]
      %v419 = vld [vmem:[%s1 + $0x1c] sm:$0xf]
      %v420 = vld [vmem:[%s1 + $0x20] sm:$0xf]
      %v421 = vld [vmem:[%s1 + $0x24] sm:$0xf]
      %v422 = vld [vmem:[%s1 + $0x28] sm:$0xf]
      %v423 = vld [vmem:[%s1 + $0x2c] sm:$0xf]
      %v424 = vld [vmem:[%s1 + $0x30] sm:$0xf]
      %v425 = vld [vmem:[%s1 + $0x34] sm:$0xf]
      %v426 = vld [vmem:[%s1 + $0x38] sm:$0xf]
      %v427 = vld [vmem:[%s1 + $0x3c] sm:$0xf]
      %v445 = vunpack.c.l.b16 %v412
      %v446 = vunpack.c.l.b16 %v413
      %v447 = vunpack.c.l.b16 %v414
      %v448 = vunpack.c.l.b16 %v415
      %v449 = vunpack.c.l.b16 %v416
      %v450 = vunpack.c.l.b16 %v417
      %v451 = vunpack.c.l.b16 %v418
      %v452 = vunpack.c.l.b16 %v419
      %v453 = vunpack.c.l.b16 %v420
      %v454 = vunpack.c.l.b16 %v421
      %v455 = vunpack.c.l.b16 %v422
      %v456 = vunpack.c.l.b16 %v423
      %v457 = vunpack.c.l.b16 %v424
      %v458 = vunpack.c.l.b16 %v425
      %v459 = vunpack.c.l.b16 %v426
      %v460 = vunpack.c.l.b16 %v427
      %v461 = vpack.c.b16 %v446, %v445
      %v462 = vpack.c.b16 %v448, %v447
      %v463 = vpack.c.b16 %v450, %v449
      %v464 = vpack.c.b16 %v452, %v451
      %v465 = vpack.c.b16 %v454, %v453
      %v466 = vpack.c.b16 %v456, %v455
      %v467 = vpack.c.b16 %v458, %v457
      %v468 = vpack.c.b16 %v460, %v459
      %477 = vmatprep.subr.bf16.mxu0 0
      %478 = vmatpush1.bf16.msra.mxu0 %v461
      %479 = vmatprep.subr.bf16.mxu0 0
      %480 = vmatpush1.bf16.msra.mxu0 %v462
      %481 = vmatprep.subr.bf16.mxu0 0
      %482 = vmatpush1.bf16.msra.mxu0 %v463
      %483 = vmatprep.subr.bf16.mxu0 0
      %484 = vmatpush1.bf16.msra.mxu0 %v464
      %485 = vmatprep.subr.bf16.mxu0 0
      %486 = vmatpush1.bf16.msra.mxu0 %v465
      %487 = vmatprep.subr.bf16.mxu0 0
      %488 = vmatpush1.bf16.msra.mxu0 %v466
      %489 = vmatprep.subr.bf16.mxu0 0
      %490 = vmatpush1.bf16.msra.mxu0 %v467
      %491 = vmatprep.subr.bf16.mxu0 0
      %492 = vmatpush1.bf16.msra.mxu0 %v468
      %493 = vmatprep.subr.bf16.mxu0 0
      %494 = vmatpush1.bf16.msra.mxu0 0
      %495 = vmatprep.subr.bf16.mxu0 0
      %496 = vmatpush1.bf16.msra.mxu0 0
      %497 = vmatprep.subr.bf16.mxu0 0
      %498 = vmatpush1.bf16.msra.mxu0 0
      %499 = vmatprep.subr.bf16.mxu0 0
      %500 = vmatpush1.bf16.msra.mxu0 0
      %501 = vmatprep.subr.bf16.mxu0 0
      %502 = vmatpush1.bf16.msra.mxu0 0
      %503 = vmatprep.subr.bf16.mxu0 0
      %504 = vmatpush1.bf16.msra.mxu0 0
      %505 = vmatprep.subr.bf16.mxu0 0
      %506 = vmatpush1.bf16.msra.mxu0 0
      %507 = vmatprep.subr.bf16.mxu0 0
      %508 = vmatpush1.bf16.msra.mxu0 0
      %509 = vmatprep.mubr.bf16.mxu0 0
      %510 = vmatmul.mubr.bf16.gmra.mrb[0].mxu0 %v273
      %v511 = vpop.f32.mrb[0].mxu0
      %v512 = vadd.f32 0.0, %v511
      %v513 = vpop.f32.mrb[0].mxu0
      %v514 = vpop.f32.mrb[0].mxu0
      %v515 = vadd.f32 0.0, %v514
      %v516 = vpop.f32.mrb[0].mxu0
      %517 = vdwg.mxu0
      %v518 = vadd.f32 %v404, %v512
      %v519 = vadd.f32 %v408, %v515
      %s520 = scalar_lea.vmem %s1, 64
      %v521 = vld [vmem:[%s520] sm:$0xf]
      %v522 = vld [vmem:[%s520 + $0x4] sm:$0xf]
      %v523 = vld [vmem:[%s520 + $0x8] sm:$0xf]
      %v524 = vld [vmem:[%s520 + $0xc] sm:$0xf]
      %v525 = vld [vmem:[%s520 + $0x10] sm:$0xf]
      %v526 = vld [vmem:[%s520 + $0x14] sm:$0xf]
      %v527 = vld [vmem:[%s520 + $0x18] sm:$0xf]
      %v528 = vld [vmem:[%s520 + $0x1c] sm:$0xf]
      %v529 = vld [vmem:[%s520 + $0x20] sm:$0xf]
      %v530 = vld [vmem:[%s520 + $0x24] sm:$0xf]
      %v531 = vld [vmem:[%s520 + $0x28] sm:$0xf]
      %v532 = vld [vmem:[%s520 + $0x2c] sm:$0xf]
      %v533 = vld [vmem:[%s520 + $0x30] sm:$0xf]
      %v534 = vld [vmem:[%s520 + $0x34] sm:$0xf]
      %v535 = vld [vmem:[%s520 + $0x38] sm:$0xf]
      %v536 = vld [vmem:[%s520 + $0x3c] sm:$0xf]
      %v538 = vunpack.c.l.b16 %v250
      %v539 = vpack.c.b16 %v271, %v538
      %vm540 = vcmask 1046528
      %v541 = vrot.slane %v539, 1
      %v542 = vrot.slane %v274, 1
      %v543 = vsel %vm540, %v541, %v542
      %v561 = vunpack.c.l.b16 %v521
      %v562 = vunpack.c.l.b16 %v522
      %v563 = vunpack.c.l.b16 %v523
      %v564 = vunpack.c.l.b16 %v524
      %v565 = vunpack.c.l.b16 %v525
      %v566 = vunpack.c.l.b16 %v526
      %v567 = vunpack.c.l.b16 %v527
      %v568 = vunpack.c.l.b16 %v528
      %v569 = vunpack.c.l.b16 %v529
      %v570 = vunpack.c.l.b16 %v530
      %v571 = vunpack.c.l.b16 %v531
      %v572 = vunpack.c.l.b16 %v532
      %v573 = vunpack.c.l.b16 %v533
      %v574 = vunpack.c.l.b16 %v534
      %v575 = vunpack.c.l.b16 %v535
      %v576 = vunpack.c.l.b16 %v536
      %v577 = vpack.c.b16 %v562, %v561
      %v578 = vpack.c.b16 %v564, %v563
      %v579 = vpack.c.b16 %v566, %v565
      %v580 = vpack.c.b16 %v568, %v567
      %v581 = vpack.c.b16 %v570, %v569
      %v582 = vpack.c.b16 %v572, %v571
      %v583 = vpack.c.b16 %v574, %v573
      %v584 = vpack.c.b16 %v576, %v575
      %593 = vmatprep.subr.bf16.mxu0 0
      %594 = vmatpush1.bf16.msra.mxu0 %v577
      %595 = vmatprep.subr.bf16.mxu0 0
      %596 = vmatpush1.bf16.msra.mxu0 %v578
      %597 = vmatprep.subr.bf16.mxu0 0
      %598 = vmatpush1.bf16.msra.mxu0 %v579
      %599 = vmatprep.subr.bf16.mxu0 0
      %600 = vmatpush1.bf16.msra.mxu0 %v580
      %601 = vmatprep.subr.bf16.mxu0 0
      %602 = vmatpush1.bf16.msra.mxu0 %v581
      %603 = vmatprep.subr.bf16.mxu0 0
      %604 = vmatpush1.bf16.msra.mxu0 %v582
      %605 = vmatprep.subr.bf16.mxu0 0
      %606 = vmatpush1.bf16.msra.mxu0 %v583
      %607 = vmatprep.subr.bf16.mxu0 0
      %608 = vmatpush1.bf16.msra.mxu0 %v584
      %609 = vmatprep.subr.bf16.mxu0 0
      %610 = vmatpush1.bf16.msra.mxu0 0
      %611 = vmatprep.subr.bf16.mxu0 0
      %612 = vmatpush1.bf16.msra.mxu0 0
      %613 = vmatprep.subr.bf16.mxu0 0
      %614 = vmatpush1.bf16.msra.mxu0 0
      %615 = vmatprep.subr.bf16.mxu0 0
      %616 = vmatpush1.bf16.msra.mxu0 0
      %617 = vmatprep.subr.bf16.mxu0 0
      %618 = vmatpush1.bf16.msra.mxu0 0
      %619 = vmatprep.subr.bf16.mxu0 0
      %620 = vmatpush1.bf16.msra.mxu0 0
      %621 = vmatprep.subr.bf16.mxu0 0
      %622 = vmatpush1.bf16.msra.mxu0 0
      %623 = vmatprep.subr.bf16.mxu0 0
      %624 = vmatpush1.bf16.msra.mxu0 0
      %625 = vmatprep.mubr.bf16.mxu0 0
      %626 = vmatmul.mubr.bf16.gmra.mrb[0].mxu0 %v543
      %v627 = vpop.f32.mrb[0].mxu0
      %v628 = vadd.f32 0.0, %v627
      %v629 = vpop.f32.mrb[0].mxu0
      %v630 = vpop.f32.mrb[0].mxu0
      %v631 = vadd.f32 0.0, %v630
      %v632 = vpop.f32.mrb[0].mxu0
      %633 = vdwg.mxu0
      %v634 = vadd.f32 %v518, %v628
      %v635 = vadd.f32 %v519, %v631
      %v636 = vadd.f32 %v634, %v635
      %v637 = vrot.slane %v636, 4
      %v638 = vadd.f32 %v636, %v637
      %v639 = vrot.slane %v638, 2
      %v640 = vadd.f32 %v638, %v639
      %v641 = vrot.slane %v640, 1
      %v642 = vadd.f32 %v640, %v641
      %643 = vst [vmem:[%s241] sm:$0x1] %v642
      %v644 = vmul.f32 %v634, %v634
      %v645 = vmul.f32 %v635, %v635
      %v646 = vadd.f32 %v644, %v645
      %v647 = vrot.slane %v646, 4
      %v648 = vadd.f32 %v646, %v647
      %v649 = vrot.slane %v648, 2
      %v650 = vadd.f32 %v648, %v649
      %v651 = vrot.slane %v650, 1
      %v652 = vadd.f32 %v650, %v651
      %653 = vst [vmem:[%s241 + $0x1] sm:$0x1] %v652
      %v654 = vadd.f32 %v406, %v410
      %v655 = vrot.slane %v654, 4
      %v656 = vadd.f32 %v654, %v655
      %v657 = vrot.slane %v656, 2
      %v658 = vadd.f32 %v656, %v657
      %v659 = vrot.slane %v658, 1
      %v660 = vadd.f32 %v658, %v659
      %661 = vst [vmem:[%s245] sm:$0x1] %v660
      %v662 = vmul.f32 %v406, %v406
      %v663 = vmul.f32 %v410, %v410
      %v664 = vadd.f32 %v662, %v663
      %v665 = vrot.slane %v664, 4
      %v666 = vadd.f32 %v664, %v665
      %v667 = vrot.slane %v666, 2
      %v668 = vadd.f32 %v666, %v667
      %v669 = vrot.slane %v668, 1
      %v670 = vadd.f32 %v668, %v669
      %671 = vst [vmem:[%s245 + $0x1] sm:$0x1] %v670
      %vm672 = vcmask 1040384
      %vm673 = vsmask.f32 256
      %vm674 = vmand %vm672, %vm673
      %v675 = vld [vmem:[%s237] sm:$0x1]
      %v676 = vsel %vm674, 0, %v675
      %677 = vst [vmem:[%s237] sm:$0x1] %v676
      %vm678 = vsmask.f32 7938
      %vm679 = vmand %vm672, %vm678
      %v680 = vld [vmem:[%s237 + $0x8] sm:$0x1]
      %v681 = vsel %vm679, 0, %v680
      %682 = vst [vmem:[%s237 + $0x8] sm:$0x1] %v681
      %v683 = vpack.c.bf16 %v635, %v634
      %v685 = vunpack.c.l.b16 %v683
      %v686 = vunpack.c.h.b16 %v683
      %v687 = vpack.c.b16 %v685, %v685
      %v688 = vpack.c.b16 %v686, %v686
      %vm689 = vsmask.f32 4368
      %vm690 = vmor %vm673, %vm689
      %v692 = vshrl.u32 %v687, 16
      %v694 = vrot.slane %v692, 7
      %v695 = vshll.u32 %v687, 16
      %v697 = vor.u32 %v694, %v695
      %v698 = vrot.slane %v694, 4
      %v700 = vshrl.u32 %v688, 16
      %v702 = vrot.slane %v700, 7
      %v703 = vshll.u32 %v688, 16
      %v705 = vor.u32 %v702, %v703
      %v706 = vsel %vm690, %v698, %v705
      %v707 = vrot.slane %v702, 4
      %vm711 = vcmask 1043456
      %vm712 = vmand %vm711, %vm678
      %v713 = vld [vmem:[%s237] sm:$0xf]
      %v714 = vsel %vm712, %v697, %v713
      %715 = vst [vmem:[%s237] sm:$0xf] %v714
      %716 = vst [vmem:[%s237 + $0x4] sm:$0xf] %v706
      %v717 = vld [vmem:[%s237 + $0x8] sm:$0x1]
      %v718 = vsel %vm674, %v707, %v717
      %719 = vst [vmem:[%s237 + $0x8] sm:$0x1] %v718
      %p720 = scmp.lt.s32.totalorder %s17, 1
      %s721 = scalar_select %p720, %s17, 1
      %s722 = smul.addr %s721, 3
      %s723 = smul.addr %s722, 4
      %s724 = scalar_lea.vmem %s3, %s723
      %p725 = scmp.lt.s32.totalorder %s17, 1
      %s726 = scalar_select %p725, %s17, 1
      %s727 = smul.addr %s726, 2
      %s728 = scalar_lea.vmem %s4, %s727
      %p729 = scmp.lt.s32.totalorder %s17, 1
      %s730 = scalar_select %p729, %s17, 1
      %s731 = smul.addr %s730, 2
      %s732 = scalar_lea.vmem %s5, %s731
      // Predicated region
      $region33: #{_lambda_.3} parent=31 // pred_check
        %p733 = pneg %p103
      $region34: #{_lambda_.3} parent=31 // pred_check_branch
        %735 = sbr.rel (%p733) target = $region36
      $region35: #{_lambda_.3} parent=31 // pred_region
        _
      $region36: #{_lambda_.3} parent=31 // pred_fallthru
        _
      // Predicated region
      $region37: #{_lambda_.3} parent=31 // pred_check
        %p736 = pneg %p129
      $region38: #{_lambda_.3} parent=31 // pred_check_branch
        %738 = sbr.rel (%p736) target = $region40
      $region39: #{_lambda_.3} parent=31 // pred_region
        _
      $region40: #{_lambda_.3} parent=31 // pred_fallthru
        _
      // Predicated region
      $region41: #{_lambda_.3} parent=31 // pred_check
        %p739 = pneg %p155
      $region42: #{_lambda_.3} parent=31 // pred_check_branch
        %741 = sbr.rel (%p739) target = $region44
      $region43: #{_lambda_.3} parent=31 // pred_region
        _
      $region44: #{_lambda_.3} parent=31 // pred_fallthru
        _
    $region32: #{_lambda_.3} parent=5 // pred_fallthru
      _
    %p742 = scmp.le.s32.totalorder 2, %s12
    // Predicated region
    $region45: #{_lambda_.3} parent=5 // pred_check
      %p743 = pneg %p742
    $region46: #{_lambda_.3} parent=5 // pred_check_branch
      %745 = sbr.rel (%p743) target = $region48
    $region47: #{_lambda_.3} parent=5 // pred_region
      %s746 = ssub.s32 %s12, 2
      // Predicated region
      $region49: #{_lambda_.3} parent=47 // pred_check
        %p747 = pneg %p109
      $region50: #{_lambda_.3} parent=47 // pred_check_branch
        %749 = sbr.rel (%p747) target = $region52
      $region51: #{_lambda_.3} parent=47 // pred_region
        %p750 = scmp.lt.s32.totalorder %s18, 1
        %s751 = scalar_select %p750, %s18, 1
        %s752 = smul.addr %s751, 3
        %s753 = smul.addr %s752, 4
        %s754 = scalar_lea.vmem %s3, %s753
      $region52: #{_lambda_.3} parent=47 // pred_fallthru
        _
      // Predicated region
      $region53: #{_lambda_.3} parent=47 // pred_check
        %p755 = pneg %p135
      $region54: #{_lambda_.3} parent=47 // pred_check_branch
        %757 = sbr.rel (%p755) target = $region56
      $region55: #{_lambda_.3} parent=47 // pred_region
        %p758 = scmp.lt.s32.totalorder %s18, 1
        %s759 = scalar_select %p758, %s18, 1
        %s760 = smul.addr %s759, 2
        %s761 = scalar_lea.vmem %s4, %s760
      $region56: #{_lambda_.3} parent=47 // pred_fallthru
        _
      // Predicated region
      $region57: #{_lambda_.3} parent=47 // pred_check
        %p762 = pneg %p161
      $region58: #{_lambda_.3} parent=47 // pred_check_branch
        %764 = sbr.rel (%p762) target = $region60
      $region59: #{_lambda_.3} parent=47 // pred_region
        %p765 = scmp.lt.s32.totalorder %s18, 1
        %s766 = scalar_select %p765, %s18, 1
        %s767 = smul.addr %s766, 2
        %s768 = scalar_lea.vmem %s5, %s767
      $region60: #{_lambda_.3} parent=47 // pred_fallthru
        _
    $region48: #{_lambda_.3} parent=5 // pred_fallthru
      _
  $region6: #{_lambda_.3} parent=0 // loop_footer
    %s16 = sadd.s32 1, %s12
  $region7: #{_lambda_.3} parent=0 // loop_footer_branch
    %11 = sbr.rel target = $region3
  $region8: #{_lambda_.3} parent=0 // loop_exit
    _

// kernel: _lambda_.4
$region0: #{_lambda_.4}
  #allocation0 [shape = 'u32[]', space=smem, size = 0x4, offset = 0x4, fixed_abs, tag = 'smem constant byte address 0x4 - core index']
  #allocation1 [shape = 'u32[144,128]{1,0:T(1,128)}', space=vmem, size = 0x12000, scoped, tag = 'internal scratch']
  %s0 = inlined_call_operand.vmem [shape: bf16[2,18,128], index: 0, kind: input, shape index: {}]
  %s1 = inlined_call_operand.vmem [shape: f32[1,128], index: 1, kind: input, shape index: {}]
  %s2 = inlined_call_operand.vmem [shape: f32[1,128], index: 2, kind: input, shape index: {}]
  %s3 = inlined_call_operand.vmem [shape: bf16[3,128,128], index: 3, kind: input, shape index: {}]
  %s4 = inlined_call_operand.vmem [shape: bf16[2,16,128], index: 4, kind: output, shape index: {0}]
  %s5 = inlined_call_operand.vmem [shape: f32[2,2,128], index: 5, kind: output, shape index: {1}]
  %6 = xla_tuple %s4, %s5
  %s7 = sld [smem:[#allocation0]]
  $region57: #{_lambda_.4} parent=0
    _
  %s9 = ssub.s32 1, %s7
  %s10 = scalar_select 0, %s9, %s7
  loop: start=0, step=1, limit=4
  $region2: #{_lambda_.4} parent=0 // loop_pre_header
    _
  $region3: #{_lambda_.4} parent=0 // loop_header
    %s12 = sphi 0, %s16
    %p13 = scmp.ge.s32.totalorder %s12, 4
    %s22 = sphi 0, %s24
    %s25 = sphi 0, %s22
    %s26 = sphi 0, %s25
    %s42 = sphi 0, %s26
    %s46 = sphi 0, %s46
    %s48 = sphi 0, %s46
    %s49 = sphi 0, %s48
    %s63 = sphi 0, %s49
    %s67 = sphi 0, %s67
    %s69 = sphi 0, %s67
    %s70 = sphi 0, %s69
    %s84 = sphi 0, %s70
    %s88 = sphi 0, %s88
    %s90 = sphi 0, %s88
    %s91 = sphi 0, %s90
    %s105 = sphi 0, %s91
    %s111 = sphi 0, %s113
    %s114 = sphi 0, %s111
    %s115 = sphi 0, %s114
    %s131 = sphi 0, %s115
    %s137 = sphi 0, %s139
    %s140 = sphi 0, %s137
    %s141 = sphi 0, %s140
    %s157 = sphi 0, %s141
  $region4: #{_lambda_.4} parent=0 // loop_header_branch
    %15 = sbr.rel (%p13) target = $region8
  $region5: #{_lambda_.4} parent=0 // loop_body
    %s17 = ssub.s32 %s12, 1
    %s18 = ssub.s32 %s12, 2
    %s19 = sadd.s32 %s12, 1
    %s20 = ssub.s32 %s12, %s19
    %p21 = scmp.eq.s32.totalorder %s20, 0
    %s23 = sadd.s32 %s22, 1
    %s24 = scalar_select %p21, %s22, %s23
    %p27 = pneg %p21
    %p28 = scmp.eq.s32.totalorder %s12, 1
    %p29 = por %p27, %p28
    %p30 = scmp.ne.s32.totalorder %s22, %s25
    %p31 = scmp.eq.s32.totalorder %s12, 0
    %p32 = por %p30, %p31
    %p33 = scmp.ne.s32.totalorder %s22, %s25
    %p34 = scmp.eq.s32.totalorder %s17, 1
    %p35 = por %p33, %p34
    %p36 = scmp.ne.s32.totalorder %s25, %s26
    %p37 = scmp.eq.s32.totalorder %s17, 0
    %p38 = por %p36, %p37
    %p39 = scmp.ne.s32.totalorder %s25, %s26
    %p40 = scmp.eq.s32.totalorder %s18, 1
    %p41 = por %p39, %p40
    %p43 = scmp.ne.s32.totalorder %s26, %s42
    %p44 = scmp.eq.s32.totalorder %s18, 0
    %p45 = por %p43, %p44
    %s47 = sadd.s32 %s46, 1
    %p50 = scmp.eq.s32.totalorder %s12, 1
    %p51 = scmp.ne.s32.totalorder %s46, %s48
    %p52 = scmp.eq.s32.totalorder %s12, 0
    %p53 = por %p51, %p52
    %p54 = scmp.ne.s32.totalorder %s46, %s48
    %p55 = scmp.eq.s32.totalorder %s17, 1
    %p56 = por %p54, %p55
    %p57 = scmp.ne.s32.totalorder %s48, %s49
    %p58 = scmp.eq.s32.totalorder %s17, 0
    %p59 = por %p57, %p58
    %p60 = scmp.ne.s32.totalorder %s48, %s49
    %p61 = scmp.eq.s32.totalorder %s18, 1
    %p62 = por %p60, %p61
    %p64 = scmp.ne.s32.totalorder %s49, %s63
    %p65 = scmp.eq.s32.totalorder %s18, 0
    %p66 = por %p64, %p65
    %s68 = sadd.s32 %s67, 1
    %p71 = scmp.eq.s32.totalorder %s12, 1
    %p72 = scmp.ne.s32.totalorder %s67, %s69
    %p73 = scmp.eq.s32.totalorder %s12, 0
    %p74 = por %p72, %p73
    %p75 = scmp.ne.s32.totalorder %s67, %s69
    %p76 = scmp.eq.s32.totalorder %s17, 1
    %p77 = por %p75, %p76
    %p78 = scmp.ne.s32.totalorder %s69, %s70
    %p79 = scmp.eq.s32.totalorder %s17, 0
    %p80 = por %p78, %p79
    %p81 = scmp.ne.s32.totalorder %s69, %s70
    %p82 = scmp.eq.s32.totalorder %s18, 1
    %p83 = por %p81, %p82
    %p85 = scmp.ne.s32.totalorder %s70, %s84
    %p86 = scmp.eq.s32.totalorder %s18, 0
    %p87 = por %p85, %p86
    %s89 = sadd.s32 %s88, 1
    %p92 = scmp.eq.s32.totalorder %s12, 1
    %p93 = scmp.ne.s32.totalorder %s88, %s90
    %p94 = scmp.eq.s32.totalorder %s12, 0
    %p95 = por %p93, %p94
    %p96 = scmp.ne.s32.totalorder %s88, %s90
    %p97 = scmp.eq.s32.totalorder %s17, 1
    %p98 = por %p96, %p97
    %p99 = scmp.ne.s32.totalorder %s90, %s91
    %p100 = scmp.eq.s32.totalorder %s17, 0
    %p101 = por %p99, %p100
    %p102 = scmp.ne.s32.totalorder %s90, %s91
    %p103 = scmp.eq.s32.totalorder %s18, 1
    %p104 = por %p102, %p103
    %p106 = scmp.ne.s32.totalorder %s91, %s105
    %p107 = scmp.eq.s32.totalorder %s18, 0
    %p108 = por %p106, %p107
    %s109 = ssub.s32 %s12, %s19
    %p110 = scmp.eq.s32.totalorder %s109, 0
    %s112 = sadd.s32 %s111, 1
    %s113 = scalar_select %p110, %s111, %s112
    %p116 = pneg %p110
    %p117 = scmp.eq.s32.totalorder %s12, 1
    %p118 = por %p116, %p117
    %p119 = scmp.ne.s32.totalorder %s111, %s114
    %p120 = scmp.eq.s32.totalorder %s12, 0
    %p121 = por %p119, %p120
    %p122 = scmp.ne.s32.totalorder %s111, %s114
    %p123 = scmp.eq.s32.totalorder %s17, 1
    %p124 = por %p122, %p123
    %p125 = scmp.ne.s32.totalorder %s114, %s115
    %p126 = scmp.eq.s32.totalorder %s17, 0
    %p127 = por %p125, %p126
    %p128 = scmp.ne.s32.totalorder %s114, %s115
    %p129 = scmp.eq.s32.totalorder %s18, 1
    %p130 = por %p128, %p129
    %p132 = scmp.ne.s32.totalorder %s115, %s131
    %p133 = scmp.eq.s32.totalorder %s18, 0
    %p134 = por %p132, %p133
    %s135 = ssub.s32 %s12, %s19
    %p136 = scmp.eq.s32.totalorder %s135, 0
    %s138 = sadd.s32 %s137, 1
    %s139 = scalar_select %p136, %s137, %s138
    %p142 = pneg %p136
    %p143 = scmp.eq.s32.totalorder %s12, 1
    %p144 = por %p142, %p143
    %p145 = scmp.ne.s32.totalorder %s137, %s140
    %p146 = scmp.eq.s32.totalorder %s12, 0
    %p147 = por %p145, %p146
    %p148 = scmp.ne.s32.totalorder %s137, %s140
    %p149 = scmp.eq.s32.totalorder %s17, 1
    %p150 = por %p148, %p149
    %p151 = scmp.ne.s32.totalorder %s140, %s141
    %p152 = scmp.eq.s32.totalorder %s17, 0
    %p153 = por %p151, %p152
    %p154 = scmp.ne.s32.totalorder %s140, %s141
    %p155 = scmp.eq.s32.totalorder %s18, 1
    %p156 = por %p154, %p155
    %p158 = scmp.ne.s32.totalorder %s141, %s157
    %p159 = scmp.eq.s32.totalorder %s18, 0
    %p160 = por %p158, %p159
    %p161 = scmp.le.s32.totalorder 1, %s12
    %p162 = scmp.lt.s32.totalorder %s12, 3
    %p163 = pnand %p161, %p162
    %p164 = pneg %p163
    // Predicated region
    $region9: #{_lambda_.4} parent=5 // pred_check
      _
    $region10: #{_lambda_.4} parent=5 // pred_check_branch
      %166 = sbr.rel (%p163) target = $region12
    $region11: #{_lambda_.4} parent=5 // pred_region
      %s167 = ssub.s32 %s12, 1
      // Predicated region
      $region13: #{_lambda_.4} parent=11 // pred_check
        %p168 = pneg %p59
      $region14: #{_lambda_.4} parent=11 // pred_check_branch
        %170 = sbr.rel (%p168) target = $region16
      $region15: #{_lambda_.4} parent=11 // pred_region
        _
      $region16: #{_lambda_.4} parent=11 // pred_fallthru
        _
      // Predicated region
      $region17: #{_lambda_.4} parent=11 // pred_check
        %p171 = pneg %p80
      $region18: #{_lambda_.4} parent=11 // pred_check_branch
        %173 = sbr.rel (%p171) target = $region20
      $region19: #{_lambda_.4} parent=11 // pred_region
        _
      $region20: #{_lambda_.4} parent=11 // pred_fallthru
        _
      // Predicated region
      $region21: #{_lambda_.4} parent=11 // pred_check
        %p174 = pneg %p101
      $region22: #{_lambda_.4} parent=11 // pred_check_branch
        %176 = sbr.rel (%p174) target = $region24
      $region23: #{_lambda_.4} parent=11 // pred_region
        _
      $region24: #{_lambda_.4} parent=11 // pred_fallthru
        _
    $region12: #{_lambda_.4} parent=5 // pred_fallthru
      _
    %p177 = scmp.lt.s32.totalorder %s12, 2
    // Predicated region
    $region25: #{_lambda_.4} parent=5 // pred_check
      %p178 = pneg %p177
    $region26: #{_lambda_.4} parent=5 // pred_check_branch
      %180 = sbr.rel (%p178) target = $region28
    $region27: #{_lambda_.4} parent=5 // pred_region
      // Predicated region
      $region29: #{_lambda_.4} parent=27 // pred_check
        %p181 = pneg %p32
      $region30: #{_lambda_.4} parent=27 // pred_check_branch
        %183 = sbr.rel (%p181) target = $region32
      $region31: #{_lambda_.4} parent=27 // pred_region
        %p184 = scmp.lt.s32.totalorder %s12, 1
        %s185 = scalar_select %p184, %s12, 1
        %s186 = smul.addr %s185, 3
        %s187 = smul.addr %s186, 4
        %s188 = scalar_lea.vmem %s0, %s187
      $region32: #{_lambda_.4} parent=27 // pred_fallthru
        _
    $region28: #{_lambda_.4} parent=5 // pred_fallthru
      _
    %p189 = scmp.le.s32.totalorder 1, %s12
    %p190 = scmp.lt.s32.totalorder %s12, 3
    %p191 = pnand %p189, %p190
    %p192 = pneg %p191
    // Predicated region
    $region33: #{_lambda_.4} parent=5 // pred_check
      _
    $region34: #{_lambda_.4} parent=5 // pred_check_branch
      %194 = sbr.rel (%p191) target = $region36
    $region35: #{_lambda_.4} parent=5 // pred_region
      %s195 = ssub.s32 %s12, 1
      %p196 = scmp.lt.s32.totalorder %s17, 1
      %s197 = scalar_select %p196, %s17, 1
      %s198 = smul.addr %s197, 3
      %s199 = smul.addr %s198, 4
      %s200 = scalar_lea.vmem %s0, %s199
      %p201 = pneg %p38
      %p202 = pneg %p35
      %p203 = pneg %p59
      %p204 = pneg %p56
      %p205 = pneg %p80
      %p206 = pneg %p77
      %p207 = pneg %p101
      %p208 = pneg %p98
      %p209 = pneg %p127
      %p210 = pneg %p124
      %p211 = scmp.lt.s32.totalorder %s17, 1
      %s212 = scalar_select %p211, %s17, 1
      %s213 = smul.addr %s212, 2
      %s214 = smul.addr %s213, 4
      %s215 = scalar_lea.vmem %s4, %s214
      %p216 = pneg %p153
      %p217 = pneg %p150
      %p218 = scmp.lt.s32.totalorder %s17, 1
      %s219 = scalar_select %p218, %s17, 1
      %s220 = smul.addr %s219, 2
      %s221 = scalar_lea.vmem %s5, %s220
      %p222 = scmp.lt.s32.totalorder %s17, 1
      %s223 = scalar_select %p222, %s17, 1
      %s224 = smul.addr %s223, 3
      %s225 = smul.addr %s224, 4
      %s226 = scalar_lea.vmem %s0, %s225
      %p227 = scmp.lt.s32.totalorder %s17, 1
      %s228 = scalar_select %p227, %s17, 1
      %s229 = smul.addr %s228, 2
      %s230 = smul.addr %s229, 4
      %s231 = scalar_lea.vmem %s4, %s230
      %p232 = scmp.lt.s32.totalorder %s17, 1
      %s233 = scalar_select %p232, %s17, 1
      %s234 = smul.addr %s233, 2
      %s235 = scalar_lea.vmem %s5, %s234
      %v237 = vld [vmem:[%s226] sm:$0xf]
      %v238 = vld [vmem:[%s226 + $0x4] sm:$0xf]
      %v239 = vld [vmem:[%s226 + $0x8] sm:$0x1]
      %v240 = vunpack.c.l.bf16 %v237
      %v241 = vunpack.c.l.bf16 %v238
      %v242 = vunpack.c.l.bf16 %v239
      %v243 = vlaneseq
      %v244 = vshrl.u32 %v243, 7
      %v245 = vadd.s32 %v244, 8
      %v246 = vadd.s32 %v244, 16
      %vm247 = vcmp.ge.s32.totalorder %v244, 1
      %vm248 = vcmp.ge.s32.totalorder %v245, 1
      %vm249 = vcmp.ge.s32.totalorder %v246, 1
      %vm250 = vcmp.le.s32.totalorder %v244, 16
      %vm251 = vcmp.le.s32.totalorder %v245, 16
      %vm252 = vcmp.le.s32.totalorder %v246, 16
      %vm253 = vmand %vm247, %vm250
      %vm254 = vmand %vm248, %vm251
      %vm255 = vmand %vm249, %vm252
      %v256 = vld [vmem:[%s1] sm:$0x1]
      %v258 = vlaneseq
      %v259 = vshrl.u32 %v258, 7
      %v260 = vsub.s32 0, %v259
      %v261 = vrot.slane %v256, %v260
      %v263 = vmul.f32 %v240, %v261
      %v264 = vmul.f32 %v241, %v261
      %v265 = vmul.f32 %v242, %v261
      %v266 = vld [vmem:[%s2] sm:$0x1]
      %v268 = vlaneseq
      %v269 = vshrl.u32 %v268, 7
      %v270 = vsub.s32 0, %v269
      %v271 = vrot.slane %v266, %v270
      %v273 = vadd.f32 %v263, %v271
      %v274 = vadd.f32 %v264, %v271
      %v275 = vadd.f32 %v265, %v271
      %v276 = vmax.f32 %v273, 0.0
      %v277 = vmax.f32 %v274, 0.0
      %v278 = vmax.f32 %v275, 0.0
      %v279 = vsel %vm253, %v276, 0.0
      %v280 = vsel %vm254, %v277, 0.0
      %v281 = vsel %vm255, %v278, 0.0
      %v282 = vpack.c.bf16 %v280, %v279
      %v283 = vpack.c.bf16 %v281, %v281
      %s284 = scalar_lea.vmem %s3, 64
      %v285 = vld [vmem:[%s284] sm:$0xf]
      %v286 = vld [vmem:[%s284 + $0x4] sm:$0xf]
      %v287 = vld [vmem:[%s284 + $0x8] sm:$0xf]
      %v288 = vld [vmem:[%s284 + $0xc] sm:$0xf]
      %v289 = vld [vmem:[%s284 + $0x10] sm:$0xf]
      %v290 = vld [vmem:[%s284 + $0x14] sm:$0xf]
      %v291 = vld [vmem:[%s284 + $0x18] sm:$0xf]
      %v292 = vld [vmem:[%s284 + $0x1c] sm:$0xf]
      %v293 = vld [vmem:[%s284 + $0x20] sm:$0xf]
      %v294 = vld [vmem:[%s284 + $0x24] sm:$0xf]
      %v295 = vld [vmem:[%s284 + $0x28] sm:$0xf]
      %v296 = vld [vmem:[%s284 + $0x2c] sm:$0xf]
      %v297 = vld [vmem:[%s284 + $0x30] sm:$0xf]
      %v298 = vld [vmem:[%s284 + $0x34] sm:$0xf]
      %v299 = vld [vmem:[%s284 + $0x38] sm:$0xf]
      %v300 = vld [vmem:[%s284 + $0x3c] sm:$0xf]
      %v301 = vld [vmem:[%s3] sm:$0xf]
      %v302 = vld [vmem:[%s3 + $0x4] sm:$0xf]
      %v303 = vld [vmem:[%s3 + $0x8] sm:$0xf]
      %v304 = vld [vmem:[%s3 + $0xc] sm:$0xf]
      %v305 = vld [vmem:[%s3 + $0x10] sm:$0xf]
      %v306 = vld [vmem:[%s3 + $0x14] sm:$0xf]
      %v307 = vld [vmem:[%s3 + $0x18] sm:$0xf]
      %v308 = vld [vmem:[%s3 + $0x1c] sm:$0xf]
      %v309 = vld [vmem:[%s3 + $0x20] sm:$0xf]
      %v310 = vld [vmem:[%s3 + $0x24] sm:$0xf]
      %v311 = vld [vmem:[%s3 + $0x28] sm:$0xf]
      %v312 = vld [vmem:[%s3 + $0x2c] sm:$0xf]
      %v313 = vld [vmem:[%s3 + $0x30] sm:$0xf]
      %v314 = vld [vmem:[%s3 + $0x34] sm:$0xf]
      %v315 = vld [vmem:[%s3 + $0x38] sm:$0xf]
      %v316 = vld [vmem:[%s3 + $0x3c] sm:$0xf]
      %v333 = vunpack.c.l.b16 %v301
      %v334 = vunpack.c.l.b16 %v302
      %v335 = vunpack.c.l.b16 %v303
      %v336 = vunpack.c.l.b16 %v304
      %v337 = vunpack.c.l.b16 %v305
      %v338 = vunpack.c.l.b16 %v306
      %v339 = vunpack.c.l.b16 %v307
      %v340 = vunpack.c.l.b16 %v308
      %v341 = vunpack.c.l.b16 %v309
      %v342 = vunpack.c.l.b16 %v310
      %v343 = vunpack.c.l.b16 %v311
      %v344 = vunpack.c.l.b16 %v312
      %v345 = vunpack.c.l.b16 %v313
      %v346 = vunpack.c.l.b16 %v314
      %v347 = vunpack.c.l.b16 %v315
      %v348 = vunpack.c.l.b16 %v316
      %v349 = vpack.c.b16 %v334, %v333
      %v350 = vpack.c.b16 %v336, %v335
      %v351 = vpack.c.b16 %v338, %v337
      %v352 = vpack.c.b16 %v340, %v339
      %v353 = vpack.c.b16 %v342, %v341
      %v354 = vpack.c.b16 %v344, %v343
      %v355 = vpack.c.b16 %v346, %v345
      %v356 = vpack.c.b16 %v348, %v347
      %365 = vmatprep.subr.bf16.mxu0 0
      %366 = vmatpush1.bf16.msra.mxu0 %v349
      %367 = vmatprep.subr.bf16.mxu0 0
      %368 = vmatpush1.bf16.msra.mxu0 %v350
      %369 = vmatprep.subr.bf16.mxu0 0
      %370 = vmatpush1.bf16.msra.mxu0 %v351
      %371 = vmatprep.subr.bf16.mxu0 0
      %372 = vmatpush1.bf16.msra.mxu0 %v352
      %373 = vmatprep.subr.bf16.mxu0 0
      %374 = vmatpush1.bf16.msra.mxu0 %v353
      %375 = vmatprep.subr.bf16.mxu0 0
      %376 = vmatpush1.bf16.msra.mxu0 %v354
      %377 = vmatprep.subr.bf16.mxu0 0
      %378 = vmatpush1.bf16.msra.mxu0 %v355
      %379 = vmatprep.subr.bf16.mxu0 0
      %380 = vmatpush1.bf16.msra.mxu0 %v356
      %381 = vmatprep.subr.bf16.mxu0 0
      %382 = vmatpush1.bf16.msra.mxu0 0
      %383 = vmatprep.subr.bf16.mxu0 0
      %384 = vmatpush1.bf16.msra.mxu0 0
      %385 = vmatprep.subr.bf16.mxu0 0
      %386 = vmatpush1.bf16.msra.mxu0 0
      %387 = vmatprep.subr.bf16.mxu0 0
      %388 = vmatpush1.bf16.msra.mxu0 0
      %389 = vmatprep.subr.bf16.mxu0 0
      %390 = vmatpush1.bf16.msra.mxu0 0
      %391 = vmatprep.subr.bf16.mxu0 0
      %392 = vmatpush1.bf16.msra.mxu0 0
      %393 = vmatprep.subr.bf16.mxu0 0
      %394 = vmatpush1.bf16.msra.mxu0 0
      %395 = vmatprep.subr.bf16.mxu0 0
      %396 = vmatpush1.bf16.msra.mxu0 0
      %397 = vmatprep.mubr.bf16.mxu0 0
      %398 = vmatmul.mubr.bf16.gmra.mrb[0].mxu0 %v282
      %v399 = vpop.f32.mrb[0].mxu0
      %v400 = vadd.f32 0.0, %v399
      %v401 = vpop.f32.mrb[0].mxu0
      %v402 = vpop.f32.mrb[0].mxu0
      %v403 = vadd.f32 0.0, %v402
      %v404 = vpop.f32.mrb[0].mxu0
      %405 = vdwg.mxu0
      %vm406 = vsmask.f32 7424
      %v408 = vshrl.u32 %v282, 16
      %v410 = vshll.u32 %v282, 16
      %v412 = vrot.slane %v410, 1
      %v413 = vor.u32 %v408, %v412
      %v415 = vshll.u32 %v283, 16
      %v417 = vrot.slane %v415, 1
      %v418 = vsel %vm406, %v413, %v417
      %v436 = vunpack.c.l.b16 %v285
      %v437 = vunpack.c.l.b16 %v286
      %v438 = vunpack.c.l.b16 %v287
      %v439 = vunpack.c.l.b16 %v288
      %v440 = vunpack.c.l.b16 %v289
      %v441 = vunpack.c.l.b16 %v290
      %v442 = vunpack.c.l.b16 %v291
      %v443 = vunpack.c.l.b16 %v292
      %v444 = vunpack.c.l.b16 %v293
      %v445 = vunpack.c.l.b16 %v294
      %v446 = vunpack.c.l.b16 %v295
      %v447 = vunpack.c.l.b16 %v296
      %v448 = vunpack.c.l.b16 %v297
      %v449 = vunpack.c.l.b16 %v298
      %v450 = vunpack.c.l.b16 %v299
      %v451 = vunpack.c.l.b16 %v300
      %v452 = vpack.c.b16 %v437, %v436
      %v453 = vpack.c.b16 %v439, %v438
      %v454 = vpack.c.b16 %v441, %v440
      %v455 = vpack.c.b16 %v443, %v442
      %v456 = vpack.c.b16 %v445, %v444
      %v457 = vpack.c.b16 %v447, %v446
      %v458 = vpack.c.b16 %v449, %v448
      %v459 = vpack.c.b16 %v451, %v450
      %468 = vmatprep.subr.bf16.mxu0 0
      %469 = vmatpush1.bf16.msra.mxu0 %v452
      %470 = vmatprep.subr.bf16.mxu0 0
      %471 = vmatpush1.bf16.msra.mxu0 %v453
      %472 = vmatprep.subr.bf16.mxu0 0
      %473 = vmatpush1.bf16.msra.mxu0 %v454
      %474 = vmatprep.subr.bf16.mxu0 0
      %475 = vmatpush1.bf16.msra.mxu0 %v455
      %476 = vmatprep.subr.bf16.mxu0 0
      %477 = vmatpush1.bf16.msra.mxu0 %v456
      %478 = vmatprep.subr.bf16.mxu0 0
      %479 = vmatpush1.bf16.msra.mxu0 %v457
      %480 = vmatprep.subr.bf16.mxu0 0
      %481 = vmatpush1.bf16.msra.mxu0 %v458
      %482 = vmatprep.subr.bf16.mxu0 0
      %483 = vmatpush1.bf16.msra.mxu0 %v459
      %484 = vmatprep.subr.bf16.mxu0 0
      %485 = vmatpush1.bf16.msra.mxu0 0
      %486 = vmatprep.subr.bf16.mxu0 0
      %487 = vmatpush1.bf16.msra.mxu0 0
      %488 = vmatprep.subr.bf16.mxu0 0
      %489 = vmatpush1.bf16.msra.mxu0 0
      %490 = vmatprep.subr.bf16.mxu0 0
      %491 = vmatpush1.bf16.msra.mxu0 0
      %492 = vmatprep.subr.bf16.mxu0 0
      %493 = vmatpush1.bf16.msra.mxu0 0
      %494 = vmatprep.subr.bf16.mxu0 0
      %495 = vmatpush1.bf16.msra.mxu0 0
      %496 = vmatprep.subr.bf16.mxu0 0
      %497 = vmatpush1.bf16.msra.mxu0 0
      %498 = vmatprep.subr.bf16.mxu0 0
      %499 = vmatpush1.bf16.msra.mxu0 0
      %500 = vmatprep.mubr.bf16.mxu0 0
      %501 = vmatmul.mubr.bf16.gmra.mrb[0].mxu0 %v418
      %v502 = vpop.f32.mrb[0].mxu0
      %v503 = vadd.f32 %v400, %v502
      %v504 = vpop.f32.mrb[0].mxu0
      %v505 = vpop.f32.mrb[0].mxu0
      %v506 = vadd.f32 %v403, %v505
      %v507 = vpop.f32.mrb[0].mxu0
      %508 = vdwg.mxu0
      %s509 = scalar_lea.vmem %s3, 128
      %v510 = vld [vmem:[%s509] sm:$0xf]
      %v511 = vld [vmem:[%s509 + $0x4] sm:$0xf]
      %v512 = vld [vmem:[%s509 + $0x8] sm:$0xf]
      %v513 = vld [vmem:[%s509 + $0xc] sm:$0xf]
      %v514 = vld [vmem:[%s509 + $0x10] sm:$0xf]
      %v515 = vld [vmem:[%s509 + $0x14] sm:$0xf]
      %v516 = vld [vmem:[%s509 + $0x18] sm:$0xf]
      %v517 = vld [vmem:[%s509 + $0x1c] sm:$0xf]
      %v518 = vld [vmem:[%s509 + $0x20] sm:$0xf]
      %v519 = vld [vmem:[%s509 + $0x24] sm:$0xf]
      %v520 = vld [vmem:[%s509 + $0x28] sm:$0xf]
      %v521 = vld [vmem:[%s509 + $0x2c] sm:$0xf]
      %v522 = vld [vmem:[%s509 + $0x30] sm:$0xf]
      %v523 = vld [vmem:[%s509 + $0x34] sm:$0xf]
      %v524 = vld [vmem:[%s509 + $0x38] sm:$0xf]
      %v525 = vld [vmem:[%s509 + $0x3c] sm:$0xf]
      %vm528 = vcmask 1046528
      %v529 = vrot.slane %v282, 1
      %v530 = vrot.slane %v283, 1
      %v531 = vsel %vm528, %v529, %v530
      %v549 = vunpack.c.l.b16 %v510
      %v550 = vunpack.c.l.b16 %v511
      %v551 = vunpack.c.l.b16 %v512
      %v552 = vunpack.c.l.b16 %v513
      %v553 = vunpack.c.l.b16 %v514
      %v554 = vunpack.c.l.b16 %v515
      %v555 = vunpack.c.l.b16 %v516
      %v556 = vunpack.c.l.b16 %v517
      %v557 = vunpack.c.l.b16 %v518
      %v558 = vunpack.c.l.b16 %v519
      %v559 = vunpack.c.l.b16 %v520
      %v560 = vunpack.c.l.b16 %v521
      %v561 = vunpack.c.l.b16 %v522
      %v562 = vunpack.c.l.b16 %v523
      %v563 = vunpack.c.l.b16 %v524
      %v564 = vunpack.c.l.b16 %v525
      %v565 = vpack.c.b16 %v550, %v549
      %v566 = vpack.c.b16 %v552, %v551
      %v567 = vpack.c.b16 %v554, %v553
      %v568 = vpack.c.b16 %v556, %v555
      %v569 = vpack.c.b16 %v558, %v557
      %v570 = vpack.c.b16 %v560, %v559
      %v571 = vpack.c.b16 %v562, %v561
      %v572 = vpack.c.b16 %v564, %v563
      %581 = vmatprep.subr.bf16.mxu0 0
      %582 = vmatpush1.bf16.msra.mxu0 %v565
      %583 = vmatprep.subr.bf16.mxu0 0
      %584 = vmatpush1.bf16.msra.mxu0 %v566
      %585 = vmatprep.subr.bf16.mxu0 0
      %586 = vmatpush1.bf16.msra.mxu0 %v567
      %587 = vmatprep.subr.bf16.mxu0 0
      %588 = vmatpush1.bf16.msra.mxu0 %v568
      %589 = vmatprep.subr.bf16.mxu0 0
      %590 = vmatpush1.bf16.msra.mxu0 %v569
      %591 = vmatprep.subr.bf16.mxu0 0
      %592 = vmatpush1.bf16.msra.mxu0 %v570
      %593 = vmatprep.subr.bf16.mxu0 0
      %594 = vmatpush1.bf16.msra.mxu0 %v571
      %595 = vmatprep.subr.bf16.mxu0 0
      %596 = vmatpush1.bf16.msra.mxu0 %v572
      %597 = vmatprep.subr.bf16.mxu0 0
      %598 = vmatpush1.bf16.msra.mxu0 0
      %599 = vmatprep.subr.bf16.mxu0 0
      %600 = vmatpush1.bf16.msra.mxu0 0
      %601 = vmatprep.subr.bf16.mxu0 0
      %602 = vmatpush1.bf16.msra.mxu0 0
      %603 = vmatprep.subr.bf16.mxu0 0
      %604 = vmatpush1.bf16.msra.mxu0 0
      %605 = vmatprep.subr.bf16.mxu0 0
      %606 = vmatpush1.bf16.msra.mxu0 0
      %607 = vmatprep.subr.bf16.mxu0 0
      %608 = vmatpush1.bf16.msra.mxu0 0
      %609 = vmatprep.subr.bf16.mxu0 0
      %610 = vmatpush1.bf16.msra.mxu0 0
      %611 = vmatprep.subr.bf16.mxu0 0
      %612 = vmatpush1.bf16.msra.mxu0 0
      %613 = vmatprep.mubr.bf16.mxu0 0
      %614 = vmatmul.mubr.bf16.gmra.mrb[0].mxu0 %v531
      %v615 = vpop.f32.mrb[0].mxu0
      %v616 = vadd.f32 0.0, %v615
      %v617 = vpop.f32.mrb[0].mxu0
      %v618 = vpop.f32.mrb[0].mxu0
      %v619 = vadd.f32 0.0, %v618
      %v620 = vpop.f32.mrb[0].mxu0
      %621 = vdwg.mxu0
      %v622 = vadd.f32 %v503, %v616
      %v623 = vadd.f32 %v506, %v619
      %v624 = vadd.f32 %v622, %v623
      %v625 = vrot.slane %v624, 4
      %v626 = vadd.f32 %v624, %v625
      %v627 = vrot.slane %v626, 2
      %v628 = vadd.f32 %v626, %v627
      %v629 = vrot.slane %v628, 1
      %v630 = vadd.f32 %v628, %v629
      %631 = vst [vmem:[%s235] sm:$0x1] %v630
      %v632 = vmul.f32 %v622, %v622
      %v633 = vmul.f32 %v623, %v623
      %v634 = vadd.f32 %v632, %v633
      %v635 = vrot.slane %v634, 4
      %v636 = vadd.f32 %v634, %v635
      %v637 = vrot.slane %v636, 2
      %v638 = vadd.f32 %v636, %v637
      %v639 = vrot.slane %v638, 1
      %v640 = vadd.f32 %v638, %v639
      %641 = vst [vmem:[%s235 + $0x1] sm:$0x1] %v640
      %v642 = vpack.c.bf16 %v623, %v622
      %v644 = vunpack.c.l.b16 %v642
      %v645 = vunpack.c.h.b16 %v642
      %v646 = vpack.c.b16 %v644, %v644
      %v647 = vpack.c.b16 %v645, %v645
      %650 = vst [vmem:[%s231] sm:$0xf] %v646
      %651 = vst [vmem:[%s231 + $0x4] sm:$0xf] %v647
      %p652 = scmp.lt.s32.totalorder %s17, 1
      %s653 = scalar_select %p652, %s17, 1
      %s654 = smul.addr %s653, 2
      %s655 = smul.addr %s654, 4
      %s656 = scalar_lea.vmem %s4, %s655
      %p657 = scmp.lt.s32.totalorder %s17, 1
      %s658 = scalar_select %p657, %s17, 1
      %s659 = smul.addr %s658, 2
      %s660 = scalar_lea.vmem %s5, %s659
      // Predicated region
      $region37: #{_lambda_.4} parent=35 // pred_check
        %p661 = pneg %p124
      $region38: #{_lambda_.4} parent=35 // pred_check_branch
        %663 = sbr.rel (%p661) target = $region40
      $region39: #{_lambda_.4} parent=35 // pred_region
        _
      $region40: #{_lambda_.4} parent=35 // pred_fallthru
        _
      // Predicated region
      $region41: #{_lambda_.4} parent=35 // pred_check
        %p664 = pneg %p150
      $region42: #{_lambda_.4} parent=35 // pred_check_branch
        %666 = sbr.rel (%p664) target = $region44
      $region43: #{_lambda_.4} parent=35 // pred_region
        _
      $region44: #{_lambda_.4} parent=35 // pred_fallthru
        _
    $region36: #{_lambda_.4} parent=5 // pred_fallthru
      _
    %p667 = scmp.le.s32.totalorder 2, %s12
    // Predicated region
    $region45: #{_lambda_.4} parent=5 // pred_check
      %p668 = pneg %p667
    $region46: #{_lambda_.4} parent=5 // pred_check_branch
      %670 = sbr.rel (%p668) target = $region48
    $region47: #{_lambda_.4} parent=5 // pred_region
      %s671 = ssub.s32 %s12, 2
      // Predicated region
      $region49: #{_lambda_.4} parent=47 // pred_check
        %p672 = pneg %p130
      $region50: #{_lambda_.4} parent=47 // pred_check_branch
        %674 = sbr.rel (%p672) target = $region52
      $region51: #{_lambda_.4} parent=47 // pred_region
        %p675 = scmp.lt.s32.totalorder %s18, 1
        %s676 = scalar_select %p675, %s18, 1
        %s677 = smul.addr %s676, 2
        %s678 = smul.addr %s677, 4
        %s679 = scalar_lea.vmem %s4, %s678
      $region52: #{_lambda_.4} parent=47 // pred_fallthru
        _
      // Predicated region
      $region53: #{_lambda_.4} parent=47 // pred_check
        %p680 = pneg %p156
      $region54: #{_lambda_.4} parent=47 // pred_check_branch
        %682 = sbr.rel (%p680) target = $region56
      $region55: #{_lambda_.4} parent=47 // pred_region
        %p683 = scmp.lt.s32.totalorder %s18, 1
        %s684 = scalar_select %p683, %s18, 1
        %s685 = smul.addr %s684, 2
        %s686 = scalar_lea.vmem %s5, %s685
      $region56: #{_lambda_.4} parent=47 // pred_fallthru
        _
    $region48: #{_lambda_.4} parent=5 // pred_fallthru
      _
  $region6: #{_lambda_.4} parent=0 // loop_footer
    %s16 = sadd.s32 1, %s12
  $region7: #{_lambda_.4} parent=0 // loop_footer_branch
    %11 = sbr.rel target = $region3
  $region8: #{_lambda_.4} parent=0 // loop_exit
    _

// kernel: _lambda_.5
$region0: #{_lambda_.5}
  #allocation0 [shape = 'u32[]', space=smem, size = 0x4, offset = 0x4, fixed_abs, tag = 'smem constant byte address 0x4 - core index']
  #allocation1 [shape = 'u32[144,128]{1,0:T(1,128)}', space=vmem, size = 0x12000, scoped, tag = 'internal scratch']
  %s0 = inlined_call_operand.vmem [shape: bf16[2,16,128], index: 0, kind: input, shape index: {}]
  %s1 = inlined_call_operand.vmem [shape: bf16[2,18,128], index: 1, kind: input, shape index: {}]
  %s2 = inlined_call_operand.vmem [shape: bf16[128,128], index: 2, kind: input, shape index: {}]
  %s3 = inlined_call_operand.vmem [shape: f32[1,128], index: 3, kind: input, shape index: {}]
  %s4 = inlined_call_operand.vmem [shape: f32[1,128], index: 4, kind: input, shape index: {}]
  %s5 = inlined_call_operand.vmem [shape: f32[1,128], index: 5, kind: input, shape index: {}]
  %s6 = inlined_call_operand.vmem [shape: f32[1,128], index: 6, kind: input, shape index: {}]
  %s7 = inlined_call_operand.vmem [shape: bf16[2,16,128], index: 7, kind: output, shape index: {}]
  %s8 = sld [smem:[#allocation0]]
  $region61: #{_lambda_.5} parent=0
    _
  %s10 = ssub.s32 1, %s8
  %s11 = scalar_select 0, %s10, %s8
  loop: start=0, step=1, limit=4
  $region2: #{_lambda_.5} parent=0 // loop_pre_header
    _
  $region3: #{_lambda_.5} parent=0 // loop_header
    %s13 = sphi 0, %s17
    %p14 = scmp.ge.s32.totalorder %s13, 4
    %s23 = sphi 0, %s25
    %s26 = sphi 0, %s23
    %s27 = sphi 0, %s26
    %s43 = sphi 0, %s27
    %s49 = sphi 0, %s51
    %s52 = sphi 0, %s49
    %s53 = sphi 0, %s52
    %s69 = sphi 0, %s53
    %s73 = sphi 0, %s73
    %s75 = sphi 0, %s73
    %s76 = sphi 0, %s75
    %s90 = sphi 0, %s76
    %s94 = sphi 0, %s94
    %s96 = sphi 0, %s94
    %s97 = sphi 0, %s96
    %s111 = sphi 0, %s97
    %s115 = sphi 0, %s115
    %s117 = sphi 0, %s115
    %s118 = sphi 0, %s117
    %s132 = sphi 0, %s118
    %s136 = sphi 0, %s136
    %s138 = sphi 0, %s136
    %s139 = sphi 0, %s138
    %s153 = sphi 0, %s139
    %s157 = sphi 0, %s157
    %s159 = sphi 0, %s157
    %s160 = sphi 0, %s159
    %s174 = sphi 0, %s160
    %s180 = sphi 0, %s182
    %s183 = sphi 0, %s180
    %s184 = sphi 0, %s183
    %s200 = sphi 0, %s184
  $region4: #{_lambda_.5} parent=0 // loop_header_branch
    %16 = sbr.rel (%p14) target = $region8
  $region5: #{_lambda_.5} parent=0 // loop_body
    %s18 = ssub.s32 %s13, 1
    %s19 = ssub.s32 %s13, 2
    %s20 = sadd.s32 %s13, 1
    %s21 = ssub.s32 %s13, %s20
    %p22 = scmp.eq.s32.totalorder %s21, 0
    %s24 = sadd.s32 %s23, 1
    %s25 = scalar_select %p22, %s23, %s24
    %p28 = pneg %p22
    %p29 = scmp.eq.s32.totalorder %s13, 1
    %p30 = por %p28, %p29
    %p31 = scmp.ne.s32.totalorder %s23, %s26
    %p32 = scmp.eq.s32.totalorder %s13, 0
    %p33 = por %p31, %p32
    %p34 = scmp.ne.s32.totalorder %s23, %s26
    %p35 = scmp.eq.s32.totalorder %s18, 1
    %p36 = por %p34, %p35
    %p37 = scmp.ne.s32.totalorder %s26, %s27
    %p38 = scmp.eq.s32.totalorder %s18, 0
    %p39 = por %p37, %p38
    %p40 = scmp.ne.s32.totalorder %s26, %s27
    %p41 = scmp.eq.s32.totalorder %s19, 1
    %p42 = por %p40, %p41
    %p44 = scmp.ne.s32.totalorder %s27, %s43
    %p45 = scmp.eq.s32.totalorder %s19, 0
    %p46 = por %p44, %p45
    %s47 = ssub.s32 %s13, %s20
    %p48 = scmp.eq.s32.totalorder %s47, 0
    %s50 = sadd.s32 %s49, 1
    %s51 = scalar_select %p48, %s49, %s50
    %p54 = pneg %p48
    %p55 = scmp.eq.s32.totalorder %s13, 1
    %p56 = por %p54, %p55
    %p57 = scmp.ne.s32.totalorder %s49, %s52
    %p58 = scmp.eq.s32.totalorder %s13, 0
    %p59 = por %p57, %p58
    %p60 = scmp.ne.s32.totalorder %s49, %s52
    %p61 = scmp.eq.s32.totalorder %s18, 1
    %p62 = por %p60, %p61
    %p63 = scmp.ne.s32.totalorder %s52, %s53
    %p64 = scmp.eq.s32.totalorder %s18, 0
    %p65 = por %p63, %p64
    %p66 = scmp.ne.s32.totalorder %s52, %s53
    %p67 = scmp.eq.s32.totalorder %s19, 1
    %p68 = por %p66, %p67
    %p70 = scmp.ne.s32.totalorder %s53, %s69
    %p71 = scmp.eq.s32.totalorder %s19, 0
    %p72 = por %p70, %p71
    %s74 = sadd.s32 %s73, 1
    %p77 = scmp.eq.s32.totalorder %s13, 1
    %p78 = scmp.ne.s32.totalorder %s73, %s75
    %p79 = scmp.eq.s32.totalorder %s13, 0
    %p80 = por %p78, %p79
    %p81 = scmp.ne.s32.totalorder %s73, %s75
    %p82 = scmp.eq.s32.totalorder %s18, 1
    %p83 = por %p81, %p82
    %p84 = scmp.ne.s32.totalorder %s75, %s76
    %p85 = scmp.eq.s32.totalorder %s18, 0
    %p86 = por %p84, %p85
    %p87 = scmp.ne.s32.totalorder %s75, %s76
    %p88 = scmp.eq.s32.totalorder %s19, 1
    %p89 = por %p87, %p88
    %p91 = scmp.ne.s32.totalorder %s76, %s90
    %p92 = scmp.eq.s32.totalorder %s19, 0
    %p93 = por %p91, %p92
    %s95 = sadd.s32 %s94, 1
    %p98 = scmp.eq.s32.totalorder %s13, 1
    %p99 = scmp.ne.s32.totalorder %s94, %s96
    %p100 = scmp.eq.s32.totalorder %s13, 0
    %p101 = por %p99, %p100
    %p102 = scmp.ne.s32.totalorder %s94, %s96
    %p103 = scmp.eq.s32.totalorder %s18, 1
    %p104 = por %p102, %p103
    %p105 = scmp.ne.s32.totalorder %s96, %s97
    %p106 = scmp.eq.s32.totalorder %s18, 0
    %p107 = por %p105, %p106
    %p108 = scmp.ne.s32.totalorder %s96, %s97
    %p109 = scmp.eq.s32.totalorder %s19, 1
    %p110 = por %p108, %p109
    %p112 = scmp.ne.s32.totalorder %s97, %s111
    %p113 = scmp.eq.s32.totalorder %s19, 0
    %p114 = por %p112, %p113
    %s116 = sadd.s32 %s115, 1
    %p119 = scmp.eq.s32.totalorder %s13, 1
    %p120 = scmp.ne.s32.totalorder %s115, %s117
    %p121 = scmp.eq.s32.totalorder %s13, 0
    %p122 = por %p120, %p121
    %p123 = scmp.ne.s32.totalorder %s115, %s117
    %p124 = scmp.eq.s32.totalorder %s18, 1
    %p125 = por %p123, %p124
    %p126 = scmp.ne.s32.totalorder %s117, %s118
    %p127 = scmp.eq.s32.totalorder %s18, 0
    %p128 = por %p126, %p127
    %p129 = scmp.ne.s32.totalorder %s117, %s118
    %p130 = scmp.eq.s32.totalorder %s19, 1
    %p131 = por %p129, %p130
    %p133 = scmp.ne.s32.totalorder %s118, %s132
    %p134 = scmp.eq.s32.totalorder %s19, 0
    %p135 = por %p133, %p134
    %s137 = sadd.s32 %s136, 1
    %p140 = scmp.eq.s32.totalorder %s13, 1
    %p141 = scmp.ne.s32.totalorder %s136, %s138
    %p142 = scmp.eq.s32.totalorder %s13, 0
    %p143 = por %p141, %p142
    %p144 = scmp.ne.s32.totalorder %s136, %s138
    %p145 = scmp.eq.s32.totalorder %s18, 1
    %p146 = por %p144, %p145
    %p147 = scmp.ne.s32.totalorder %s138, %s139
    %p148 = scmp.eq.s32.totalorder %s18, 0
    %p149 = por %p147, %p148
    %p150 = scmp.ne.s32.totalorder %s138, %s139
    %p151 = scmp.eq.s32.totalorder %s19, 1
    %p152 = por %p150, %p151
    %p154 = scmp.ne.s32.totalorder %s139, %s153
    %p155 = scmp.eq.s32.totalorder %s19, 0
    %p156 = por %p154, %p155
    %s158 = sadd.s32 %s157, 1
    %p161 = scmp.eq.s32.totalorder %s13, 1
    %p162 = scmp.ne.s32.totalorder %s157, %s159
    %p163 = scmp.eq.s32.totalorder %s13, 0
    %p164 = por %p162, %p163
    %p165 = scmp.ne.s32.totalorder %s157, %s159
    %p166 = scmp.eq.s32.totalorder %s18, 1
    %p167 = por %p165, %p166
    %p168 = scmp.ne.s32.totalorder %s159, %s160
    %p169 = scmp.eq.s32.totalorder %s18, 0
    %p170 = por %p168, %p169
    %p171 = scmp.ne.s32.totalorder %s159, %s160
    %p172 = scmp.eq.s32.totalorder %s19, 1
    %p173 = por %p171, %p172
    %p175 = scmp.ne.s32.totalorder %s160, %s174
    %p176 = scmp.eq.s32.totalorder %s19, 0
    %p177 = por %p175, %p176
    %s178 = ssub.s32 %s13, %s20
    %p179 = scmp.eq.s32.totalorder %s178, 0
    %s181 = sadd.s32 %s180, 1
    %s182 = scalar_select %p179, %s180, %s181
    %p185 = pneg %p179
    %p186 = scmp.eq.s32.totalorder %s13, 1
    %p187 = por %p185, %p186
    %p188 = scmp.ne.s32.totalorder %s180, %s183
    %p189 = scmp.eq.s32.totalorder %s13, 0
    %p190 = por %p188, %p189
    %p191 = scmp.ne.s32.totalorder %s180, %s183
    %p192 = scmp.eq.s32.totalorder %s18, 1
    %p193 = por %p191, %p192
    %p194 = scmp.ne.s32.totalorder %s183, %s184
    %p195 = scmp.eq.s32.totalorder %s18, 0
    %p196 = por %p194, %p195
    %p197 = scmp.ne.s32.totalorder %s183, %s184
    %p198 = scmp.eq.s32.totalorder %s19, 1
    %p199 = por %p197, %p198
    %p201 = scmp.ne.s32.totalorder %s184, %s200
    %p202 = scmp.eq.s32.totalorder %s19, 0
    %p203 = por %p201, %p202
    %p204 = scmp.le.s32.totalorder 1, %s13
    %p205 = scmp.lt.s32.totalorder %s13, 3
    %p206 = pnand %p204, %p205
    %p207 = pneg %p206
    // Predicated region
    $region9: #{_lambda_.5} parent=5 // pred_check
      _
    $region10: #{_lambda_.5} parent=5 // pred_check_branch
      %209 = sbr.rel (%p206) target = $region12
    $region11: #{_lambda_.5} parent=5 // pred_region
      %s210 = ssub.s32 %s13, 1
      // Predicated region
      $region13: #{_lambda_.5} parent=11 // pred_check
        %p211 = pneg %p86
      $region14: #{_lambda_.5} parent=11 // pred_check_branch
        %213 = sbr.rel (%p211) target = $region16
      $region15: #{_lambda_.5} parent=11 // pred_region
        _
      $region16: #{_lambda_.5} parent=11 // pred_fallthru
        _
      // Predicated region
      $region17: #{_lambda_.5} parent=11 // pred_check
        %p214 = pneg %p107
      $region18: #{_lambda_.5} parent=11 // pred_check_branch
        %216 = sbr.rel (%p214) target = $region20
      $region19: #{_lambda_.5} parent=11 // pred_region
        _
      $region20: #{_lambda_.5} parent=11 // pred_fallthru
        _
      // Predicated region
      $region21: #{_lambda_.5} parent=11 // pred_check
        %p217 = pneg %p128
      $region22: #{_lambda_.5} parent=11 // pred_check_branch
        %219 = sbr.rel (%p217) target = $region24
      $region23: #{_lambda_.5} parent=11 // pred_region
        _
      $region24: #{_lambda_.5} parent=11 // pred_fallthru
        _
      // Predicated region
      $region25: #{_lambda_.5} parent=11 // pred_check
        %p220 = pneg %p149
      $region26: #{_lambda_.5} parent=11 // pred_check_branch
        %222 = sbr.rel (%p220) target = $region28
      $region27: #{_lambda_.5} parent=11 // pred_region
        _
      $region28: #{_lambda_.5} parent=11 // pred_fallthru
        _
      // Predicated region
      $region29: #{_lambda_.5} parent=11 // pred_check
        %p223 = pneg %p170
      $region30: #{_lambda_.5} parent=11 // pred_check_branch
        %225 = sbr.rel (%p223) target = $region32
      $region31: #{_lambda_.5} parent=11 // pred_region
        _
      $region32: #{_lambda_.5} parent=11 // pred_fallthru
        _
    $region12: #{_lambda_.5} parent=5 // pred_fallthru
      _
    %p226 = scmp.lt.s32.totalorder %s13, 2
    // Predicated region
    $region33: #{_lambda_.5} parent=5 // pred_check
      %p227 = pneg %p226
    $region34: #{_lambda_.5} parent=5 // pred_check_branch
      %229 = sbr.rel (%p227) target = $region36
    $region35: #{_lambda_.5} parent=5 // pred_region
      // Predicated region
      $region37: #{_lambda_.5} parent=35 // pred_check
        %p230 = pneg %p33
      $region38: #{_lambda_.5} parent=35 // pred_check_branch
        %232 = sbr.rel (%p230) target = $region40
      $region39: #{_lambda_.5} parent=35 // pred_region
        %p233 = scmp.lt.s32.totalorder %s13, 1
        %s234 = scalar_select %p233, %s13, 1
        %s235 = smul.addr %s234, 2
        %s236 = smul.addr %s235, 4
        %s237 = scalar_lea.vmem %s0, %s236
      $region40: #{_lambda_.5} parent=35 // pred_fallthru
        _
      // Predicated region
      $region41: #{_lambda_.5} parent=35 // pred_check
        %p238 = pneg %p59
      $region42: #{_lambda_.5} parent=35 // pred_check_branch
        %240 = sbr.rel (%p238) target = $region44
      $region43: #{_lambda_.5} parent=35 // pred_region
        %p241 = scmp.lt.s32.totalorder %s13, 1
        %s242 = scalar_select %p241, %s13, 1
        %s243 = smul.addr %s242, 3
        %s244 = smul.addr %s243, 4
        %s245 = scalar_lea.vmem %s1, %s244
      $region44: #{_lambda_.5} parent=35 // pred_fallthru
        _
    $region36: #{_lambda_.5} parent=5 // pred_fallthru
      _
    %p246 = scmp.le.s32.totalorder 1, %s13
    %p247 = scmp.lt.s32.totalorder %s13, 3
    %p248 = pnand %p246, %p247
    %p249 = pneg %p248
    // Predicated region
    $region45: #{_lambda_.5} parent=5 // pred_check
      _
    $region46: #{_lambda_.5} parent=5 // pred_check_branch
      %251 = sbr.rel (%p248) target = $region48
    $region47: #{_lambda_.5} parent=5 // pred_region
      %s252 = ssub.s32 %s13, 1
      %p253 = scmp.lt.s32.totalorder %s18, 1
      %s254 = scalar_select %p253, %s18, 1
      %s255 = smul.addr %s254, 2
      %s256 = smul.addr %s255, 4
      %s257 = scalar_lea.vmem %s0, %s256
      %p258 = pneg %p39
      %p259 = pneg %p36
      %p260 = scmp.lt.s32.totalorder %s18, 1
      %s261 = scalar_select %p260, %s18, 1
      %s262 = smul.addr %s261, 3
      %s263 = smul.addr %s262, 4
      %s264 = scalar_lea.vmem %s1, %s263
      %p265 = pneg %p65
      %p266 = pneg %p62
      %p267 = pneg %p86
      %p268 = pneg %p83
      %p269 = pneg %p107
      %p270 = pneg %p104
      %p271 = pneg %p128
      %p272 = pneg %p125
      %p273 = pneg %p149
      %p274 = pneg %p146
      %p275 = pneg %p170
      %p276 = pneg %p167
      %p277 = pneg %p196
      %p278 = pneg %p193
      %p279 = scmp.lt.s32.totalorder %s18, 1
      %s280 = scalar_select %p279, %s18, 1
      %s281 = smul.addr %s280, 2
      %s282 = smul.addr %s281, 4
      %s283 = scalar_lea.vmem %s7, %s282
      %p284 = scmp.lt.s32.totalorder %s18, 1
      %s285 = scalar_select %p284, %s18, 1
      %s286 = smul.addr %s285, 2
      %s287 = smul.addr %s286, 4
      %s288 = scalar_lea.vmem %s0, %s287
      %p289 = scmp.lt.s32.totalorder %s18, 1
      %s290 = scalar_select %p289, %s18, 1
      %s291 = smul.addr %s290, 3
      %s292 = smul.addr %s291, 4
      %s293 = scalar_lea.vmem %s1, %s292
      %p294 = scmp.lt.s32.totalorder %s18, 1
      %s295 = scalar_select %p294, %s18, 1
      %s296 = smul.addr %s295, 2
      %s297 = smul.addr %s296, 4
      %s298 = scalar_lea.vmem %s7, %s297
      %v300 = vld [vmem:[%s293] sm:$0xf]
      %v301 = vld [vmem:[%s293 + $0x4] sm:$0xf]
      %v302 = vld [vmem:[%s293 + $0x8] sm:$0x1]
      %v303 = vld [vmem:[%s2] sm:$0xf]
      %v304 = vld [vmem:[%s2 + $0x4] sm:$0xf]
      %v305 = vld [vmem:[%s2 + $0x8] sm:$0xf]
      %v306 = vld [vmem:[%s2 + $0xc] sm:$0xf]
      %v307 = vld [vmem:[%s2 + $0x10] sm:$0xf]
      %v308 = vld [vmem:[%s2 + $0x14] sm:$0xf]
      %v309 = vld [vmem:[%s2 + $0x18] sm:$0xf]
      %v310 = vld [vmem:[%s2 + $0x1c] sm:$0xf]
      %v311 = vld [vmem:[%s2 + $0x20] sm:$0xf]
      %v312 = vld [vmem:[%s2 + $0x24] sm:$0xf]
      %v313 = vld [vmem:[%s2 + $0x28] sm:$0xf]
      %v314 = vld [vmem:[%s2 + $0x2c] sm:$0xf]
      %v315 = vld [vmem:[%s2 + $0x30] sm:$0xf]
      %v316 = vld [vmem:[%s2 + $0x34] sm:$0xf]
      %v317 = vld [vmem:[%s2 + $0x38] sm:$0xf]
      %v318 = vld [vmem:[%s2 + $0x3c] sm:$0xf]
      %v322 = vunpack.c.l.b16 %v300
      %v323 = vunpack.c.l.b16 %v301
      %v324 = vunpack.c.l.b16 %v302
      %v325 = vpack.c.b16 %v323, %v322
      %v326 = vpack.c.b16 %v324, %v324
      %vm327 = vsmask.f32 7424
      %v329 = vshrl.u32 %v325, 16
      %v331 = vshll.u32 %v325, 16
      %v333 = vrot.slane %v331, 1
      %v334 = vor.u32 %v329, %v333
      %v336 = vshll.u32 %v326, 16
      %v338 = vrot.slane %v336, 1
      %v339 = vsel %vm327, %v334, %v338
      %v357 = vunpack.c.l.b16 %v303
      %v358 = vunpack.c.l.b16 %v304
      %v359 = vunpack.c.l.b16 %v305
      %v360 = vunpack.c.l.b16 %v306
      %v361 = vunpack.c.l.b16 %v307
      %v362 = vunpack.c.l.b16 %v308
      %v363 = vunpack.c.l.b16 %v309
      %v364 = vunpack.c.l.b16 %v310
      %v365 = vunpack.c.l.b16 %v311
      %v366 = vunpack.c.l.b16 %v312
      %v367 = vunpack.c.l.b16 %v313
      %v368 = vunpack.c.l.b16 %v314
      %v369 = vunpack.c.l.b16 %v315
      %v370 = vunpack.c.l.b16 %v316
      %v371 = vunpack.c.l.b16 %v317
      %v372 = vunpack.c.l.b16 %v318
      %v373 = vpack.c.b16 %v358, %v357
      %v374 = vpack.c.b16 %v360, %v359
      %v375 = vpack.c.b16 %v362, %v361
      %v376 = vpack.c.b16 %v364, %v363
      %v377 = vpack.c.b16 %v366, %v365
      %v378 = vpack.c.b16 %v368, %v367
      %v379 = vpack.c.b16 %v370, %v369
      %v380 = vpack.c.b16 %v372, %v371
      %389 = vmatprep.subr.bf16.mxu0 0
      %390 = vmatpush1.bf16.msra.mxu0 %v373
      %391 = vmatprep.subr.bf16.mxu0 0
      %392 = vmatpush1.bf16.msra.mxu0 %v374
      %393 = vmatprep.subr.bf16.mxu0 0
      %394 = vmatpush1.bf16.msra.mxu0 %v375
      %395 = vmatprep.subr.bf16.mxu0 0
      %396 = vmatpush1.bf16.msra.mxu0 %v376
      %397 = vmatprep.subr.bf16.mxu0 0
      %398 = vmatpush1.bf16.msra.mxu0 %v377
      %399 = vmatprep.subr.bf16.mxu0 0
      %400 = vmatpush1.bf16.msra.mxu0 %v378
      %401 = vmatprep.subr.bf16.mxu0 0
      %402 = vmatpush1.bf16.msra.mxu0 %v379
      %403 = vmatprep.subr.bf16.mxu0 0
      %404 = vmatpush1.bf16.msra.mxu0 %v380
      %405 = vmatprep.subr.bf16.mxu0 0
      %406 = vmatpush1.bf16.msra.mxu0 0
      %407 = vmatprep.subr.bf16.mxu0 0
      %408 = vmatpush1.bf16.msra.mxu0 0
      %409 = vmatprep.subr.bf16.mxu0 0
      %410 = vmatpush1.bf16.msra.mxu0 0
      %411 = vmatprep.subr.bf16.mxu0 0
      %412 = vmatpush1.bf16.msra.mxu0 0
      %413 = vmatprep.subr.bf16.mxu0 0
      %414 = vmatpush1.bf16.msra.mxu0 0
      %415 = vmatprep.subr.bf16.mxu0 0
      %416 = vmatpush1.bf16.msra.mxu0 0
      %417 = vmatprep.subr.bf16.mxu0 0
      %418 = vmatpush1.bf16.msra.mxu0 0
      %419 = vmatprep.subr.bf16.mxu0 0
      %420 = vmatpush1.bf16.msra.mxu0 0
      %421 = vmatprep.mubr.bf16.mxu0 0
      %422 = vmatmul.mubr.bf16.gmra.mrb[0].mxu0 %v339
      %v423 = vpop.f32.mrb[0].mxu0
      %v424 = vadd.f32 0.0, %v423
      %v425 = vpop.f32.mrb[0].mxu0
      %v426 = vpop.f32.mrb[0].mxu0
      %v427 = vadd.f32 0.0, %v426
      %v428 = vpop.f32.mrb[0].mxu0
      %429 = vdwg.mxu0
      %v430 = vld [vmem:[%s288] sm:$0xf]
      %v431 = vld [vmem:[%s288 + $0x4] sm:$0xf]
      %v432 = vunpack.c.l.bf16 %v430
      %v433 = vunpack.c.l.bf16 %v431
      %v434 = vld [vmem:[%s3] sm:$0x1]
      %v436 = vlaneseq
      %v437 = vshrl.u32 %v436, 7
      %v438 = vsub.s32 0, %v437
      %v439 = vrot.slane %v434, %v438
      %v441 = vmul.f32 %v432, %v439
      %v442 = vmul.f32 %v433, %v439
      %v443 = vld [vmem:[%s4] sm:$0x1]
      %v445 = vlaneseq
      %v446 = vshrl.u32 %v445, 7
      %v447 = vsub.s32 0, %v446
      %v448 = vrot.slane %v443, %v447
      %v450 = vadd.f32 %v441, %v448
      %v451 = vadd.f32 %v442, %v448
      %v452 = vld [vmem:[%s5] sm:$0x1]
      %v454 = vlaneseq
      %v455 = vshrl.u32 %v454, 7
      %v456 = vsub.s32 0, %v455
      %v457 = vrot.slane %v452, %v456
      %v459 = vmul.f32 %v424, %v457
      %v460 = vmul.f32 %v427, %v457
      %v461 = vld [vmem:[%s6] sm:$0x1]
      %v463 = vlaneseq
      %v464 = vshrl.u32 %v463, 7
      %v465 = vsub.s32 0, %v464
      %v466 = vrot.slane %v461, %v465
      %v468 = vadd.f32 %v459, %v466
      %v469 = vadd.f32 %v460, %v466
      %v470 = vadd.f32 %v450, %v468
      %v471 = vadd.f32 %v451, %v469
      %v472 = vmax.f32 %v470, 0.0
      %v473 = vmax.f32 %v471, 0.0
      %v474 = vpack.c.bf16 %v473, %v472
      %v476 = vunpack.c.l.b16 %v474
      %v477 = vunpack.c.h.b16 %v474
      %v478 = vpack.c.b16 %v476, %v476
      %v479 = vpack.c.b16 %v477, %v477
      %482 = vst [vmem:[%s298] sm:$0xf] %v478
      %483 = vst [vmem:[%s298 + $0x4] sm:$0xf] %v479
      %p484 = scmp.lt.s32.totalorder %s18, 1
      %s485 = scalar_select %p484, %s18, 1
      %s486 = smul.addr %s485, 2
      %s487 = smul.addr %s486, 4
      %s488 = scalar_lea.vmem %s7, %s487
      // Predicated region
      $region49: #{_lambda_.5} parent=47 // pred_check
        %p489 = pneg %p193
      $region50: #{_lambda_.5} parent=47 // pred_check_branch
        %491 = sbr.rel (%p489) target = $region52
      $region51: #{_lambda_.5} parent=47 // pred_region
        _
      $region52: #{_lambda_.5} parent=47 // pred_fallthru
        _
    $region48: #{_lambda_.5} parent=5 // pred_fallthru
      _
    %p492 = scmp.le.s32.totalorder 2, %s13
    // Predicated region
    $region53: #{_lambda_.5} parent=5 // pred_check
      %p493 = pneg %p492
    $region54: #{_lambda_.5} parent=5 // pred_check_branch
      %495 = sbr.rel (%p493) target = $region56
    $region55: #{_lambda_.5} parent=5 // pred_region
      %s496 = ssub.s32 %s13, 2
      // Predicated region
      $region57: #{_lambda_.5} parent=55 // pred_check
        %p497 = pneg %p199
      $region58: #{_lambda_.5} parent=55 // pred_check_branch
        %499 = sbr.rel (%p497) target = $region60
      $region59: #{_lambda_.5} parent=55 // pred_region
        %p500 = scmp.lt.s32.totalorder %s19, 1
        %s501 = scalar_select %p500, %s19, 1
        %s502 = smul.addr %s501, 2
        %s503 = smul.addr %s502, 4
        %s504 = scalar_lea.vmem %s7, %s503
      $region60: #{_lambda_.5} parent=55 // pred_fallthru
        _
    $region56: #{_lambda_.5} parent=5 // pred_fallthru
      _
  $region6: #{_lambda_.5} parent=0 // loop_footer
    %s17 = sadd.s32 1, %s13
  $region7: #{_lambda_.5} parent=0 // loop_footer_branch
    %12 = sbr.rel target = $region3
  $region8: #{_lambda_.5} parent=0 // loop_exit
    _

</llo_original>
